<compile_context>
chip_gen: v5e
topology: v5e:2x2
jax: 0.10.0
libtpu: 0.0.40
codegen_flags: <defaults>
</compile_context>

<pallas_src>
import math

import jax
import jax.numpy as jnp
from jax.experimental import pallas as pl
from jax.experimental.pallas import tpu as pltpu

# -------------------- model dimensions (from __init__) --------------------
HIDDEN_SIZES = (1024, 128, 64, 16, 1)

_MIB = 1024 * 1024


def _round_up(x, m):
    return ((x + m - 1) // m) * m


def _cdiv(a, b):
    return -(-a // b)


def mlp_kernel(x_ref,
               w1_ref, b1_ref,
               w2_ref, b2_ref,
               wt_ref, bt_ref,
               o_ref):
    """Fused MLP: two MXU-friendly layers + pre-folded tail; weights VMEM-resident."""
    cdtype = w1_ref.dtype  # compute dtype for the MXU operands (bf16 by default)

    x = x_ref[...].astype(cdtype)
    # Layer 1: [tile_b, IN] @ [IN, 1024]   (Dropout(0.2): identity at eval)
    h = jnp.dot(x, w1_ref[...], preferred_element_type=jnp.float32) + b1_ref[...]
    # Layer 2: [tile_b, 1024] @ [1024, 128] (Dropout(0.2): identity at eval)
    h = jnp.dot(h.astype(cdtype), w2_ref[...],
                preferred_element_type=jnp.float32) + b2_ref[...]
    # Folded tail (layers 3-5, dropout identity): [tile_b, 128] @ [128, 1]
    h = jnp.dot(h.astype(cdtype), wt_ref[...],
                preferred_element_type=jnp.float32) + bt_ref[...]

    o_ref[...] = h.astype(o_ref.dtype)


def aesthetic_predictor_forward(x, params, *, tile_b=256,
                                weight_dtype=jnp.bfloat16,
                                vmem_budget_bytes=48 * _MIB):
    """x: [B, IN] float32.  params: list of 5 (W [in,out], b [1,out]) pairs."""
    B, IN = x.shape
    x = x.astype(jnp.float32)

    (w1, b1), (w2, b2), (w3, b3), (w4, b4), (w5, b5) = [
        (w.astype(jnp.float32), b.astype(jnp.float32)) for (w, b) in params
    ]

    # ---- Fold the tiny tail layers exactly (inference only) ----
    w_tail = w3 @ w4 @ w5                     # [128, 1]
    b_tail = (b3 @ w4 + b4) @ w5 + b5         # [1, 1]

    # ---- bf16 weights, f32 biases (bias added after f32 accumulation) ----
    w1c = w1.astype(weight_dtype)
    w2c = w2.astype(weight_dtype)
    wtc = w_tail.astype(weight_dtype)

    # ---- choose the batch tile against an explicit VMEM budget ----
    # Each weight BlockSpec still reserves two VMEM buffers (constant index_map
    # only means it is DMA'd once), so charge 2x for everything.
    static_bytes = 2 * (w1c.nbytes + w2c.nbytes + wtc.nbytes
                        + b1.nbytes + b2.nbytes + b_tail.nbytes)

    def step_bytes(tb):
        return static_bytes + 2 * tb * IN * 4 + 2 * tb * 4  # x + out double buffers

    b8 = _round_up(B, 8)
    t = max(8, min(_round_up(tile_b, 8), b8))
    while t > 8 and step_bytes(t) > vmem_budget_bytes:
        t = max(8, _round_up(t // 2, 8))
    # Keep >= 2 grid steps when possible so v7x's 2 TensorCores both get work.
    if b8 >= 16 and _cdiv(b8, t) < 2:
        t = _round_up(_cdiv(b8, 2), 8)

    Bp = _round_up(B, t)
    x_in = x if Bp == B else jnp.pad(x, ((0, Bp - B), (0, 0)))
    grid = (Bp // t,)

    # Raise the scoped VMEM limit (v5e default is 16 MiB) but never exceed
    # v7x's 64 MiB physical VMEM.
    vmem_limit = min(64 * _MIB, max(32 * _MIB, int(step_bytes(t) * 1.25) + 2 * _MIB))

    in_specs = [
        pl.BlockSpec((t, IN), lambda i: (i, 0)),        # x: streamed per tile
        pl.BlockSpec(w1c.shape, lambda i: (0, 0)),      # weights: constant index map
        pl.BlockSpec(b1.shape, lambda i: (0, 0)),       #   -> DMA'd once, VMEM resident
        pl.BlockSpec(w2c.shape, lambda i: (0, 0)),
        pl.BlockSpec(b2.shape, lambda i: (0, 0)),
        pl.BlockSpec(wtc.shape, lambda i: (0, 0)),
        pl.BlockSpec(b_tail.shape, lambda i: (0, 0)),
    ]
    out_spec = pl.BlockSpec((t, 1), lambda i: (i, 0))

    out = pl.pallas_call(
        mlp_kernel,
        out_shape=jax.ShapeDtypeStruct((Bp, 1), jnp.float32),
        grid=grid,
        in_specs=in_specs,
        out_specs=out_spec,
        compiler_params=pltpu.CompilerParams(
            dimension_semantics=("parallel",),
            vmem_limit_bytes=vmem_limit),
    )(x_in, w1c, b1, w2c, b2, wtc, b_tail)

    return out[:B]


def init_params(input_size, key):
    """Deterministic PyTorch-Linear-style init: U(-1/sqrt(fan_in), 1/sqrt(fan_in))."""
    params = []
    fan_in = input_size
    for fan_out in HIDDEN_SIZES:
        key, kw, kb = jax.random.split(key, 3)
        bound = 1.0 / math.sqrt(fan_in)
        w = jax.random.uniform(kw, (fan_in, fan_out), jnp.float32, -bound, bound)
        b = jax.random.uniform(kb, (1, fan_out), jnp.float32, -bound, bound)
        params.append((w, b))
        fan_in = fan_out
    return params


def reference_forward(x, params):
    """Full-precision, fully layered reference (== the PyTorch module in eval)."""
    h = x.astype(jnp.float32)
    for (w, b) in params:
        h = h @ w + b
    return h


def reference_forward_matched(x, params, weight_dtype=jnp.bfloat16):
    """Pure-JAX reference using the same tail-fold + bf16 casts as the kernel."""
    (w1, b1), (w2, b2), (w3, b3), (w4, b4), (w5, b5) = params
    w_tail = w3 @ w4 @ w5
    b_tail = (b3 @ w4 + b4) @ w5 + b5
    h = jnp.dot(x.astype(weight_dtype), w1.astype(weight_dtype),
                preferred_element_type=jnp.float32) + b1
    h = jnp.dot(h.astype(weight_dtype), w2.astype(weight_dtype),
                preferred_element_type=jnp.float32) + b2
    h = jnp.dot(h.astype(weight_dtype), w_tail.astype(weight_dtype),
                preferred_element_type=jnp.float32) + b_tail
    return h


if __name__ == "__main__":
    INPUT_SIZE = 256   # small synthetic embedding size (module takes input_size as arg)
    BATCH = 20         # deliberately not a multiple of 8/tile: exercises padding path

    key = jax.random.PRNGKey(0)
    key, kx = jax.random.split(key)
    x = jax.random.normal(kx, (BATCH, INPUT_SIZE), dtype=jnp.float32)

    params = init_params(INPUT_SIZE, key)

    out = aesthetic_predictor_forward(x, params)
    out = jax.block_until_ready(out)
    assert out.shape == (BATCH, 1)

    # Tight check against a matched-precision (bf16 weights, f32 accum) reference.
    ref_matched = reference_forward_matched(x, params)
    assert jnp.allclose(out, ref_matched, atol=2e-3, rtol=2e-3), \
        "mismatch vs matched-precision JAX reference"

    # Looser check against the exact f32 layered module (bf16 weight rounding).
    ref_full = reference_forward(x, params)
    assert jnp.allclose(out, ref_full, atol=5e-2, rtol=5e-2), \
        "mismatch vs f32 layered reference"

    print("KERNEL_OK")
</pallas_src>

<mosaic_0001>
module attributes {stable_mosaic.version = 11 : i64} {
  func.func @mlp_kernel(%arg0: i32, %arg1: memref<16x256xf32, #tpu.memory_space<vmem>>, %arg2: memref<256x1024xbf16, #tpu.memory_space<vmem>>, %arg3: memref<1x1024xf32, #tpu.memory_space<vmem>>, %arg4: memref<1024x128xbf16, #tpu.memory_space<vmem>>, %arg5: memref<1x128xf32, #tpu.memory_space<vmem>>, %arg6: memref<128x1xbf16, #tpu.memory_space<vmem>>, %arg7: memref<1x1xf32, #tpu.memory_space<vmem>>, %arg8: memref<16x1xf32, #tpu.memory_space<vmem>>) attributes {dimension_semantics = [#tpu.dimension_semantics<parallel>], iteration_bounds = array<i64: 2>, scalar_prefetch = 0 : i64, scratch_operands = 0 : i64, tpu.core_type = #tpu.core_type<tc>, window_params = [{transform_indices = @transform_0, window_bounds = array<i64: 16, 256>}, {pipeline_mode = #tpu.pipeline_mode<synchronous>, transform_indices = @transform_1, window_bounds = array<i64: 256, 1024>}, {pipeline_mode = #tpu.pipeline_mode<synchronous>, transform_indices = @transform_2, window_bounds = array<i64: 1, 1024>}, {pipeline_mode = #tpu.pipeline_mode<synchronous>, transform_indices = @transform_3, window_bounds = array<i64: 1024, 128>}, {pipeline_mode = #tpu.pipeline_mode<synchronous>, transform_indices = @transform_4, window_bounds = array<i64: 1, 128>}, {pipeline_mode = #tpu.pipeline_mode<synchronous>, transform_indices = @transform_5, window_bounds = array<i64: 128, 1>}, {pipeline_mode = #tpu.pipeline_mode<synchronous>, transform_indices = @transform_6, window_bounds = array<i64: 1, 1>}, {transform_indices = @transform_7, window_bounds = array<i64: 16, 1>}]} {
    %c0 = arith.constant 0 : index
    %c0_0 = arith.constant 0 : index
    %0 = vector.load %arg1[%c0, %c0_0] : memref<16x256xf32, #tpu.memory_space<vmem>>, vector<16x256xf32>
    %1 = arith.truncf %0 : vector<16x256xf32> to vector<16x256xbf16>
    %c0_1 = arith.constant 0 : index
    %c0_2 = arith.constant 0 : index
    %2 = vector.load %arg2[%c0_1, %c0_2] : memref<256x1024xbf16, #tpu.memory_space<vmem>>, vector<256x1024xbf16>
    %cst = arith.constant dense<0.000000e+00> : vector<16x1024xf32>
    %3 = tpu.matmul %1, %2, %cst {dimension_numbers = #tpu.dot_dimension_numbers<[1], [0], [0], [1], [0, 0, 1, 1], [], []>} : vector<16x256xbf16>, vector<256x1024xbf16>, vector<16x1024xf32> -> vector<16x1024xf32>
    %c0_3 = arith.constant 0 : index
    %c0_4 = arith.constant 0 : index
    %4 = vector.load %arg3[%c0_3, %c0_4] : memref<1x1024xf32, #tpu.memory_space<vmem>>, vector<1x1024xf32>
    %5 = vector.broadcast %4 : vector<1x1024xf32> to vector<16x1024xf32>
    %6 = arith.addf %3, %5 : vector<16x1024xf32>
    %7 = arith.truncf %6 : vector<16x1024xf32> to vector<16x1024xbf16>
    %c0_5 = arith.constant 0 : index
    %c0_6 = arith.constant 0 : index
    %8 = vector.load %arg4[%c0_5, %c0_6] : memref<1024x128xbf16, #tpu.memory_space<vmem>>, vector<1024x128xbf16>
    %cst_7 = arith.constant dense<0.000000e+00> : vector<16x128xf32>
    %9 = tpu.matmul %7, %8, %cst_7 {dimension_numbers = #tpu.dot_dimension_numbers<[1], [0], [0], [1], [0, 0, 1, 1], [], []>} : vector<16x1024xbf16>, vector<1024x128xbf16>, vector<16x128xf32> -> vector<16x128xf32>
    %c0_8 = arith.constant 0 : index
    %c0_9 = arith.constant 0 : index
    %10 = vector.load %arg5[%c0_8, %c0_9] : memref<1x128xf32, #tpu.memory_space<vmem>>, vector<1x128xf32>
    %11 = vector.broadcast %10 : vector<1x128xf32> to vector<16x128xf32>
    %12 = arith.addf %9, %11 : vector<16x128xf32>
    %13 = arith.truncf %12 : vector<16x128xf32> to vector<16x128xbf16>
    %c0_10 = arith.constant 0 : index
    %c0_11 = arith.constant 0 : index
    %14 = vector.load %arg6[%c0_10, %c0_11] : memref<128x1xbf16, #tpu.memory_space<vmem>>, vector<128x1xbf16>
    %cst_12 = arith.constant dense<0.000000e+00> : vector<16x1xf32>
    %15 = tpu.matmul %13, %14, %cst_12 {dimension_numbers = #tpu.dot_dimension_numbers<[1], [0], [0], [1], [0, 0, 1, 1], [], []>} : vector<16x128xbf16>, vector<128x1xbf16>, vector<16x1xf32> -> vector<16x1xf32>
    %c0_13 = arith.constant 0 : index
    %c0_14 = arith.constant 0 : index
    %16 = vector.load %arg7[%c0_13, %c0_14] : memref<1x1xf32, #tpu.memory_space<vmem>>, vector<1x1xf32>
    %17 = vector.broadcast %16 : vector<1x1xf32> to vector<16x1xf32>
    %18 = arith.addf %15, %17 : vector<16x1xf32>
    %c0_15 = arith.constant 0 : index
    %c0_16 = arith.constant 0 : index
    %19 = vector.load %arg8[%c0_15, %c0_16] : memref<16x1xf32, #tpu.memory_space<vmem>>, vector<16x1xf32>
    tpu.vector_store %arg8[%c0_15, %c0_16], %18 {strides = array<i32>} : memref<16x1xf32, #tpu.memory_space<vmem>>, vector<16x1xf32>,
    return
  }
  func.func @transform_0(%arg0: i32) -> (i32, i32) {
    %c0_i32 = arith.constant 0 : i32
    %c0_i32_0 = arith.constant 0 : i32
    return %arg0, %c0_i32 : i32, i32
  }
  func.func @transform_1(%arg0: i32) -> (i32, i32) {
    %c0_i32 = arith.constant 0 : i32
    %c0_i32_0 = arith.constant 0 : i32
    %c0_i32_1 = arith.constant 0 : i32
    return %c0_i32, %c0_i32_0 : i32, i32
  }
  func.func @transform_2(%arg0: i32) -> (i32, i32) {
    %c0_i32 = arith.constant 0 : i32
    %c0_i32_0 = arith.constant 0 : i32
    %c0_i32_1 = arith.constant 0 : i32
    return %c0_i32, %c0_i32_0 : i32, i32
  }
  func.func @transform_3(%arg0: i32) -> (i32, i32) {
    %c0_i32 = arith.constant 0 : i32
    %c0_i32_0 = arith.constant 0 : i32
    %c0_i32_1 = arith.constant 0 : i32
    return %c0_i32, %c0_i32_0 : i32, i32
  }
  func.func @transform_4(%arg0: i32) -> (i32, i32) {
    %c0_i32 = arith.constant 0 : i32
    %c0_i32_0 = arith.constant 0 : i32
    %c0_i32_1 = arith.constant 0 : i32
    return %c0_i32, %c0_i32_0 : i32, i32
  }
  func.func @transform_5(%arg0: i32) -> (i32, i32) {
    %c0_i32 = arith.constant 0 : i32
    %c0_i32_0 = arith.constant 0 : i32
    %c0_i32_1 = arith.constant 0 : i32
    return %c0_i32, %c0_i32_0 : i32, i32
  }
  func.func @transform_6(%arg0: i32) -> (i32, i32) {
    %c0_i32 = arith.constant 0 : i32
    %c0_i32_0 = arith.constant 0 : i32
    %c0_i32_1 = arith.constant 0 : i32
    return %c0_i32, %c0_i32_0 : i32, i32
  }
  func.func @transform_7(%arg0: i32) -> (i32, i32) {
    %c0_i32 = arith.constant 0 : i32
    %c0_i32_0 = arith.constant 0 : i32
    return %arg0, %c0_i32 : i32, i32
  }
}

</mosaic_0001>

<llo_original>
// kernel: tpu_custom_call.1
$region0: #{tpu_custom_call.1}
  #allocation0 [shape = 'u32[]', space=smem, size = 0x4, offset = 0x4, fixed_abs, tag = 'smem constant byte address 0x4 - core index']
  #allocation1 [shape = 'u32[72,128]{1,0:T(1,128)}', space=vmem, size = 0x9000, scoped, tag = 'internal scratch']
  #allocation2 [shape = 'f32[1,1]{1,0:T(1,128)S(1)}', space=vmem, size = 0x200, scoped, tag = 'scoped memory for tpu_custom_call.1']
  %s0 = inlined_call_operand.vmem [shape: f32[32,256], index: 0, kind: input, shape index: {}]
  %s1 = inlined_call_operand.hbm [shape: bf16[256,1024], index: 1, kind: input, shape index: {}]
  %s2 = inlined_call_operand.hbm [shape: f32[1,1024], index: 2, kind: input, shape index: {}]
  %s3 = inlined_call_operand.hbm [shape: bf16[1024,128], index: 3, kind: input, shape index: {}]
  %s4 = inlined_call_operand.vmem [shape: f32[1,128], index: 4, kind: input, shape index: {}]
  %s5 = inlined_call_operand.vmem [shape: bf16[128,1], index: 5, kind: input, shape index: {}]
  %s6 = inlined_call_operand.<no memory space> [shape: f32[1,1], index: 6, kind: input, shape index: {}]
  %s7 = inlined_call_operand.vmem [shape: f32[32,1], index: 7, kind: output, shape index: {}]
  %s8 = sld [smem:[#allocation0]]
  $region73: #{tpu_custom_call.1} parent=0
    _
  %s10 = ssub.s32 1, %s8
  %s11 = scalar_select 0, %s10, %s8
  %v12 = vstv %s6
  %13 = vst [vmem:[#allocation2] sm:$0x1] %v12
  $region1: #{tpu_custom_call.1} parent=0
    #allocation3 [shape = 'u8[524288]{0}', space=vmem, size = 0x80000, scoped, tag = 'input window, operand 1, single buffered']
    #allocation4 [shape = 's32[2]{0}', space=sflag, size = 0x8, scoped, tag = 'scoped memory for tpu_custom_call.1']
    #allocation5 [shape = 'u8[4096]{0}', space=vmem, size = 0x1000, scoped, tag = 'input window, operand 2, single buffered']
    #allocation6 [shape = 's32[1]{0}', space=sflag, size = 0x4, scoped, tag = 'scoped memory for tpu_custom_call.1']
    #allocation7 [shape = 'u8[262144]{0}', space=vmem, size = 0x40000, scoped, tag = 'input window, operand 3, single buffered']
    %14 = vsyncpa [#allocation4], 0
    %15 = vsyncpa [#allocation6], 0
    loop: start=0, step=1, limit=4
    $region2: #{tpu_custom_call.1} parent=1 // loop_pre_header
      _
    $region3: #{tpu_custom_call.1} parent=1 // loop_header
      %s17 = sphi 0, %s21
      %p18 = scmp.ge.s32.totalorder %s17, 4
      %s27 = sphi 0, %s29
      %s30 = sphi 0, %s27
      %s31 = sphi 0, %s30
      %s47 = sphi 0, %s31
      %s51 = sphi 0, %s51
      %s53 = sphi 0, %s51
      %s54 = sphi 0, %s53
      %s68 = sphi 0, %s54
      %s72 = sphi 0, %s72
      %s74 = sphi 0, %s72
      %s75 = sphi 0, %s74
      %s89 = sphi 0, %s75
      %s93 = sphi 0, %s93
      %s95 = sphi 0, %s93
      %s96 = sphi 0, %s95
      %s110 = sphi 0, %s96
      %s114 = sphi 0, %s114
      %s116 = sphi 0, %s114
      %s117 = sphi 0, %s116
      %s131 = sphi 0, %s117
      %s135 = sphi 0, %s135
      %s137 = sphi 0, %s135
      %s138 = sphi 0, %s137
      %s152 = sphi 0, %s138
      %s156 = sphi 0, %s156
      %s158 = sphi 0, %s156
      %s159 = sphi 0, %s158
      %s173 = sphi 0, %s159
      %s179 = sphi 0, %s181
      %s182 = sphi 0, %s179
      %s183 = sphi 0, %s182
      %s199 = sphi 0, %s183
    $region4: #{tpu_custom_call.1} parent=1 // loop_header_branch
      %20 = sbr.rel (%p18) target = $region8
    $region5: #{tpu_custom_call.1} parent=1 // loop_body
      %s22 = ssub.s32 %s17, 1
      %s23 = ssub.s32 %s17, 2
      %s24 = sadd.s32 %s17, 1
      %s25 = ssub.s32 %s17, %s24
      %p26 = scmp.eq.s32.totalorder %s25, 0
      %s28 = sadd.s32 %s27, 1
      %s29 = scalar_select %p26, %s27, %s28
      %p32 = pneg %p26
      %p33 = scmp.eq.s32.totalorder %s17, 1
      %p34 = por %p32, %p33
      %p35 = scmp.ne.s32.totalorder %s27, %s30
      %p36 = scmp.eq.s32.totalorder %s17, 0
      %p37 = por %p35, %p36
      %p38 = scmp.ne.s32.totalorder %s27, %s30
      %p39 = scmp.eq.s32.totalorder %s22, 1
      %p40 = por %p38, %p39
      %p41 = scmp.ne.s32.totalorder %s30, %s31
      %p42 = scmp.eq.s32.totalorder %s22, 0
      %p43 = por %p41, %p42
      %p44 = scmp.ne.s32.totalorder %s30, %s31
      %p45 = scmp.eq.s32.totalorder %s23, 1
      %p46 = por %p44, %p45
      %p48 = scmp.ne.s32.totalorder %s31, %s47
      %p49 = scmp.eq.s32.totalorder %s23, 0
      %p50 = por %p48, %p49
      %s52 = sadd.s32 %s51, 1
      %p55 = scmp.eq.s32.totalorder %s17, 1
      %p56 = scmp.ne.s32.totalorder %s51, %s53
      %p57 = scmp.eq.s32.totalorder %s17, 0
      %p58 = por %p56, %p57
      %p59 = scmp.ne.s32.totalorder %s51, %s53
      %p60 = scmp.eq.s32.totalorder %s22, 1
      %p61 = por %p59, %p60
      %p62 = scmp.ne.s32.totalorder %s53, %s54
      %p63 = scmp.eq.s32.totalorder %s22, 0
      %p64 = por %p62, %p63
      %p65 = scmp.ne.s32.totalorder %s53, %s54
      %p66 = scmp.eq.s32.totalorder %s23, 1
      %p67 = por %p65, %p66
      %p69 = scmp.ne.s32.totalorder %s54, %s68
      %p70 = scmp.eq.s32.totalorder %s23, 0
      %p71 = por %p69, %p70
      %s73 = sadd.s32 %s72, 1
      %p76 = scmp.eq.s32.totalorder %s17, 1
      %p77 = scmp.ne.s32.totalorder %s72, %s74
      %p78 = scmp.eq.s32.totalorder %s17, 0
      %p79 = por %p77, %p78
      %p80 = scmp.ne.s32.totalorder %s72, %s74
      %p81 = scmp.eq.s32.totalorder %s22, 1
      %p82 = por %p80, %p81
      %p83 = scmp.ne.s32.totalorder %s74, %s75
      %p84 = scmp.eq.s32.totalorder %s22, 0
      %p85 = por %p83, %p84
      %p86 = scmp.ne.s32.totalorder %s74, %s75
      %p87 = scmp.eq.s32.totalorder %s23, 1
      %p88 = por %p86, %p87
      %p90 = scmp.ne.s32.totalorder %s75, %s89
      %p91 = scmp.eq.s32.totalorder %s23, 0
      %p92 = por %p90, %p91
      %s94 = sadd.s32 %s93, 1
      %p97 = scmp.eq.s32.totalorder %s17, 1
      %p98 = scmp.ne.s32.totalorder %s93, %s95
      %p99 = scmp.eq.s32.totalorder %s17, 0
      %p100 = por %p98, %p99
      %p101 = scmp.ne.s32.totalorder %s93, %s95
      %p102 = scmp.eq.s32.totalorder %s22, 1
      %p103 = por %p101, %p102
      %p104 = scmp.ne.s32.totalorder %s95, %s96
      %p105 = scmp.eq.s32.totalorder %s22, 0
      %p106 = por %p104, %p105
      %p107 = scmp.ne.s32.totalorder %s95, %s96
      %p108 = scmp.eq.s32.totalorder %s23, 1
      %p109 = por %p107, %p108
      %p111 = scmp.ne.s32.totalorder %s96, %s110
      %p112 = scmp.eq.s32.totalorder %s23, 0
      %p113 = por %p111, %p112
      %s115 = sadd.s32 %s114, 1
      %p118 = scmp.eq.s32.totalorder %s17, 1
      %p119 = scmp.ne.s32.totalorder %s114, %s116
      %p120 = scmp.eq.s32.totalorder %s17, 0
      %p121 = por %p119, %p120
      %p122 = scmp.ne.s32.totalorder %s114, %s116
      %p123 = scmp.eq.s32.totalorder %s22, 1
      %p124 = por %p122, %p123
      %p125 = scmp.ne.s32.totalorder %s116, %s117
      %p126 = scmp.eq.s32.totalorder %s22, 0
      %p127 = por %p125, %p126
      %p128 = scmp.ne.s32.totalorder %s116, %s117
      %p129 = scmp.eq.s32.totalorder %s23, 1
      %p130 = por %p128, %p129
      %p132 = scmp.ne.s32.totalorder %s117, %s131
      %p133 = scmp.eq.s32.totalorder %s23, 0
      %p134 = por %p132, %p133
      %s136 = sadd.s32 %s135, 1
      %p139 = scmp.eq.s32.totalorder %s17, 1
      %p140 = scmp.ne.s32.totalorder %s135, %s137
      %p141 = scmp.eq.s32.totalorder %s17, 0
      %p142 = por %p140, %p141
      %p143 = scmp.ne.s32.totalorder %s135, %s137
      %p144 = scmp.eq.s32.totalorder %s22, 1
      %p145 = por %p143, %p144
      %p146 = scmp.ne.s32.totalorder %s137, %s138
      %p147 = scmp.eq.s32.totalorder %s22, 0
      %p148 = por %p146, %p147
      %p149 = scmp.ne.s32.totalorder %s137, %s138
      %p150 = scmp.eq.s32.totalorder %s23, 1
      %p151 = por %p149, %p150
      %p153 = scmp.ne.s32.totalorder %s138, %s152
      %p154 = scmp.eq.s32.totalorder %s23, 0
      %p155 = por %p153, %p154
      %s157 = sadd.s32 %s156, 1
      %p160 = scmp.eq.s32.totalorder %s17, 1
      %p161 = scmp.ne.s32.totalorder %s156, %s158
      %p162 = scmp.eq.s32.totalorder %s17, 0
      %p163 = por %p161, %p162
      %p164 = scmp.ne.s32.totalorder %s156, %s158
      %p165 = scmp.eq.s32.totalorder %s22, 1
      %p166 = por %p164, %p165
      %p167 = scmp.ne.s32.totalorder %s158, %s159
      %p168 = scmp.eq.s32.totalorder %s22, 0
      %p169 = por %p167, %p168
      %p170 = scmp.ne.s32.totalorder %s158, %s159
      %p171 = scmp.eq.s32.totalorder %s23, 1
      %p172 = por %p170, %p171
      %p174 = scmp.ne.s32.totalorder %s159, %s173
      %p175 = scmp.eq.s32.totalorder %s23, 0
      %p176 = por %p174, %p175
      %s177 = ssub.s32 %s17, %s24
      %p178 = scmp.eq.s32.totalorder %s177, 0
      %s180 = sadd.s32 %s179, 1
      %s181 = scalar_select %p178, %s179, %s180
      %p184 = pneg %p178
      %p185 = scmp.eq.s32.totalorder %s17, 1
      %p186 = por %p184, %p185
      %p187 = scmp.ne.s32.totalorder %s179, %s182
      %p188 = scmp.eq.s32.totalorder %s17, 0
      %p189 = por %p187, %p188
      %p190 = scmp.ne.s32.totalorder %s179, %s182
      %p191 = scmp.eq.s32.totalorder %s22, 1
      %p192 = por %p190, %p191
      %p193 = scmp.ne.s32.totalorder %s182, %s183
      %p194 = scmp.eq.s32.totalorder %s22, 0
      %p195 = por %p193, %p194
      %p196 = scmp.ne.s32.totalorder %s182, %s183
      %p197 = scmp.eq.s32.totalorder %s23, 1
      %p198 = por %p196, %p197
      %p200 = scmp.ne.s32.totalorder %s183, %s199
      %p201 = scmp.eq.s32.totalorder %s23, 0
      %p202 = por %p200, %p201
      %p203 = scmp.le.s32.totalorder 1, %s17
      %p204 = scmp.lt.s32.totalorder %s17, 3
      %p205 = pnand %p203, %p204
      %p206 = pneg %p205
      // Predicated region
      $region9: #{tpu_custom_call.1} parent=5 // pred_check
        _
      $region10: #{tpu_custom_call.1} parent=5 // pred_check_branch
        %208 = sbr.rel (%p205) target = $region12
      $region11: #{tpu_custom_call.1} parent=5 // pred_region
        %s209 = ssub.s32 %s17, 1
        // Predicated region
        $region13: #{tpu_custom_call.1} parent=11 // pred_check
          %p210 = pneg %p64
        $region14: #{tpu_custom_call.1} parent=11 // pred_check_branch
          %212 = sbr.rel (%p210) target = $region16
        $region15: #{tpu_custom_call.1} parent=11 // pred_region
          %214 = vsyncadd [#allocation4], 0
          %s215 = sshll.u32 %s1, 4
          %s216 = int_to_ptr.hbm [resolvable:$true] %s215
          %s217 = sshll.u32 [#allocation3], 4
          %s218 = int_to_ptr.vmem [resolvable:$true] %s217
          %223 = dma.hbm_to_vmem [thread:$0]  %s216, 16384, %s218, [#allocation4], 512, 512, 32
        $region16: #{tpu_custom_call.1} parent=11 // pred_fallthru
          _
        // Predicated region
        $region17: #{tpu_custom_call.1} parent=11 // pred_check
          %p224 = pneg %p85
        $region18: #{tpu_custom_call.1} parent=11 // pred_check_branch
          %226 = sbr.rel (%p224) target = $region20
        $region19: #{tpu_custom_call.1} parent=11 // pred_region
          %228 = vsyncadd [#allocation6], 0
          %s230 = sshll.u32 %s2, 4
          %s231 = int_to_ptr.hbm [resolvable:$true] %s230
          %s232 = sshll.u32 [#allocation5], 4
          %s233 = int_to_ptr.vmem [resolvable:$true] %s232
          %235 = dma.hbm_to_vmem [thread:$0]  %s231, 128, %s233, [#allocation6]
        $region20: #{tpu_custom_call.1} parent=11 // pred_fallthru
          _
        // Predicated region
        $region21: #{tpu_custom_call.1} parent=11 // pred_check
          %p236 = pneg %p106
        $region22: #{tpu_custom_call.1} parent=11 // pred_check_branch
          %238 = sbr.rel (%p236) target = $region24
        $region23: #{tpu_custom_call.1} parent=11 // pred_region
          %240 = vsyncadd [#allocation6], 0
          %s241 = sshll.u32 %s3, 4
          %s242 = int_to_ptr.hbm [resolvable:$true] %s241
          %s243 = sshll.u32 [#allocation7], 4
          %s244 = int_to_ptr.vmem [resolvable:$true] %s243
          %249 = dma.hbm_to_vmem [thread:$0]  %s242, 8192, %s244, [#allocation6], 64, 64, 4
        $region24: #{tpu_custom_call.1} parent=11 // pred_fallthru
          _
        // Predicated region
        $region25: #{tpu_custom_call.1} parent=11 // pred_check
          %p250 = pneg %p127
        $region26: #{tpu_custom_call.1} parent=11 // pred_check_branch
          %252 = sbr.rel (%p250) target = $region28
        $region27: #{tpu_custom_call.1} parent=11 // pred_region
          _
        $region28: #{tpu_custom_call.1} parent=11 // pred_fallthru
          _
        // Predicated region
        $region29: #{tpu_custom_call.1} parent=11 // pred_check
          %p253 = pneg %p148
        $region30: #{tpu_custom_call.1} parent=11 // pred_check_branch
          %255 = sbr.rel (%p253) target = $region32
        $region31: #{tpu_custom_call.1} parent=11 // pred_region
          _
        $region32: #{tpu_custom_call.1} parent=11 // pred_fallthru
          _
        // Predicated region
        $region33: #{tpu_custom_call.1} parent=11 // pred_check
          %p256 = pneg %p169
        $region34: #{tpu_custom_call.1} parent=11 // pred_check_branch
          %258 = sbr.rel (%p256) target = $region36
        $region35: #{tpu_custom_call.1} parent=11 // pred_region
          _
        $region36: #{tpu_custom_call.1} parent=11 // pred_fallthru
          _
      $region12: #{tpu_custom_call.1} parent=5 // pred_fallthru
        _
      %p259 = scmp.lt.s32.totalorder %s17, 2
      // Predicated region
      $region37: #{tpu_custom_call.1} parent=5 // pred_check
        %p260 = pneg %p259
      $region38: #{tpu_custom_call.1} parent=5 // pred_check_branch
        %262 = sbr.rel (%p260) target = $region40
      $region39: #{tpu_custom_call.1} parent=5 // pred_region
        // Predicated region
        $region41: #{tpu_custom_call.1} parent=39 // pred_check
          %p263 = pneg %p37
        $region42: #{tpu_custom_call.1} parent=39 // pred_check_branch
          %265 = sbr.rel (%p263) target = $region44
        $region43: #{tpu_custom_call.1} parent=39 // pred_region
          %s266 = smul.u32 2, %s17
          %p267 = scmp.lt.s32.totalorder %s266, 3
          %s268 = scalar_select %p267, %s266, 3
          %s269 = smul.addr %s268, 2
          %s270 = smul.addr %s269, 8
          %s271 = scalar_lea.vmem %s0, %s270
          %s272 = smul.u32 2, %s17
        $region44: #{tpu_custom_call.1} parent=39 // pred_fallthru
          _
      $region40: #{tpu_custom_call.1} parent=5 // pred_fallthru
        _
      %p273 = scmp.le.s32.totalorder 1, %s17
      %p274 = scmp.lt.s32.totalorder %s17, 3
      %p275 = pnand %p273, %p274
      %p276 = pneg %p275
      // Predicated region
      $region45: #{tpu_custom_call.1} parent=5 // pred_check
        _
      $region46: #{tpu_custom_call.1} parent=5 // pred_check_branch
        %278 = sbr.rel (%p275) target = $region48
      $region47: #{tpu_custom_call.1} parent=5 // pred_region
        %s279 = ssub.s32 %s17, 1
        // Predicated region
        $region49: #{tpu_custom_call.1} parent=47 // pred_check
          %p280 = pneg %p64
        $region50: #{tpu_custom_call.1} parent=47 // pred_check_branch
          %282 = sbr.rel (%p280) target = $region52
        $region51: #{tpu_custom_call.1} parent=47 // pred_region
          %284 = dma.done [#allocation4], 16384
        $region52: #{tpu_custom_call.1} parent=47 // pred_fallthru
          _
        // Predicated region
        $region53: #{tpu_custom_call.1} parent=47 // pred_check
          %p285 = pneg %p85
        $region54: #{tpu_custom_call.1} parent=47 // pred_check_branch
          %287 = sbr.rel (%p285) target = $region56
        $region55: #{tpu_custom_call.1} parent=47 // pred_region
          %289 = dma.done [#allocation6], 128
        $region56: #{tpu_custom_call.1} parent=47 // pred_fallthru
          _
        // Predicated region
        $region57: #{tpu_custom_call.1} parent=47 // pred_check
          %p290 = pneg %p106
        $region58: #{tpu_custom_call.1} parent=47 // pred_check_branch
          %292 = sbr.rel (%p290) target = $region60
        $region59: #{tpu_custom_call.1} parent=47 // pred_region
          %294 = dma.done [#allocation6], 8192
        $region60: #{tpu_custom_call.1} parent=47 // pred_fallthru
          _
        %s295 = smul.u32 2, %s22
        %p296 = scmp.lt.s32.totalorder %s295, 3
        %s297 = scalar_select %p296, %s295, 3
        %s298 = smul.addr %s297, 2
        %s299 = smul.addr %s298, 8
        %s300 = scalar_lea.vmem %s0, %s299
        %p301 = pneg %p43
        %p302 = pneg %p40
        %p303 = pneg %p64
        %p304 = pneg %p61
        %p305 = pneg %p85
        %p306 = pneg %p82
        %p307 = pneg %p106
        %p308 = pneg %p103
        %p309 = pneg %p127
        %p310 = pneg %p124
        %p311 = pneg %p148
        %p312 = pneg %p145
        %p313 = pneg %p169
        %p314 = pneg %p166
        %p315 = pneg %p195
        %p316 = pneg %p192
        %s317 = smul.u32 2, %s22
        %p318 = scmp.lt.s32.totalorder %s317, 3
        %s319 = scalar_select %p318, %s317, 3
        %s320 = smul.addr %s319, 8
        %s321 = scalar_lea.vmem %s7, %s320
        %s322 = smul.u32 2, %s22
        %p323 = scmp.lt.s32.totalorder %s322, 3
        %s324 = scalar_select %p323, %s322, 3
        %s325 = smul.addr %s324, 2
        %s326 = smul.addr %s325, 8
        %s327 = scalar_lea.vmem %s0, %s326
        %s328 = smul.u32 2, %s22
        %s329 = smul.u32 2, %s22
        %p330 = scmp.lt.s32.totalorder %s329, 3
        %s331 = scalar_select %p330, %s329, 3
        %s332 = smul.addr %s331, 8
        %s333 = scalar_lea.vmem %s7, %s332
        %s334 = smul.u32 2, %s22
        %v335 = vld [vmem:[%s327] sm:$0xff]
        %v336 = vld [vmem:[%s327 + $0x8] sm:$0xff]
        %v337 = vld [vmem:[%s327 + $0x10] sm:$0xff]
        %v338 = vld [vmem:[%s327 + $0x18] sm:$0xff]
        %v339 = vpack.c.bf16 %v337, %v335
        %v340 = vpack.c.bf16 %v338, %v336
        %v341 = vld [vmem:[#allocation3] sm:$0xff]
        %v342 = vld [vmem:[#allocation3 + $0x8] sm:$0xff]
        %v343 = vld [vmem:[#allocation3 + $0x10] sm:$0xff]
        %v344 = vld [vmem:[#allocation3 + $0x18] sm:$0xff]
        %v345 = vld [vmem:[#allocation3 + $0x20] sm:$0xff]
        %v346 = vld [vmem:[#allocation3 + $0x28] sm:$0xff]
        %v347 = vld [vmem:[#allocation3 + $0x30] sm:$0xff]
        %v348 = vld [vmem:[#allocation3 + $0x38] sm:$0xff]
        %v349 = vld [vmem:[#allocation3 + $0x40] sm:$0xff]
        %v350 = vld [vmem:[#allocation3 + $0x48] sm:$0xff]
        %v351 = vld [vmem:[#allocation3 + $0x50] sm:$0xff]
        %v352 = vld [vmem:[#allocation3 + $0x58] sm:$0xff]
        %v353 = vld [vmem:[#allocation3 + $0x60] sm:$0xff]
        %v354 = vld [vmem:[#allocation3 + $0x68] sm:$0xff]
        %v355 = vld [vmem:[#allocation3 + $0x70] sm:$0xff]
        %v356 = vld [vmem:[#allocation3 + $0x78] sm:$0xff]
        %v357 = vld [vmem:[#allocation3 + $0x80] sm:$0xff]
        %v358 = vld [vmem:[#allocation3 + $0x88] sm:$0xff]
        %v359 = vld [vmem:[#allocation3 + $0x90] sm:$0xff]
        %v360 = vld [vmem:[#allocation3 + $0x98] sm:$0xff]
        %v361 = vld [vmem:[#allocation3 + $0xa0] sm:$0xff]
        %v362 = vld [vmem:[#allocation3 + $0xa8] sm:$0xff]
        %v363 = vld [vmem:[#allocation3 + $0xb0] sm:$0xff]
        %v364 = vld [vmem:[#allocation3 + $0xb8] sm:$0xff]
        %v365 = vld [vmem:[#allocation3 + $0xc0] sm:$0xff]
        %v366 = vld [vmem:[#allocation3 + $0xc8] sm:$0xff]
        %v367 = vld [vmem:[#allocation3 + $0xd0] sm:$0xff]
        %v368 = vld [vmem:[#allocation3 + $0xd8] sm:$0xff]
        %v369 = vld [vmem:[#allocation3 + $0xe0] sm:$0xff]
        %v370 = vld [vmem:[#allocation3 + $0xe8] sm:$0xff]
        %v371 = vld [vmem:[#allocation3 + $0xf0] sm:$0xff]
        %v372 = vld [vmem:[#allocation3 + $0xf8] sm:$0xff]
        %v373 = vld [vmem:[#allocation3 + $0x100] sm:$0xff]
        %v374 = vld [vmem:[#allocation3 + $0x108] sm:$0xff]
        %v375 = vld [vmem:[#allocation3 + $0x110] sm:$0xff]
        %v376 = vld [vmem:[#allocation3 + $0x118] sm:$0xff]
        %v377 = vld [vmem:[#allocation3 + $0x120] sm:$0xff]
        %v378 = vld [vmem:[#allocation3 + $0x128] sm:$0xff]
        %v379 = vld [vmem:[#allocation3 + $0x130] sm:$0xff]
        %v380 = vld [vmem:[#allocation3 + $0x138] sm:$0xff]
        %v381 = vld [vmem:[#allocation3 + $0x140] sm:$0xff]
        %v382 = vld [vmem:[#allocation3 + $0x148] sm:$0xff]
        %v383 = vld [vmem:[#allocation3 + $0x150] sm:$0xff]
        %v384 = vld [vmem:[#allocation3 + $0x158] sm:$0xff]
        %v385 = vld [vmem:[#allocation3 + $0x160] sm:$0xff]
        %v386 = vld [vmem:[#allocation3 + $0x168] sm:$0xff]
        %v387 = vld [vmem:[#allocation3 + $0x170] sm:$0xff]
        %v388 = vld [vmem:[#allocation3 + $0x178] sm:$0xff]
        %v389 = vld [vmem:[#allocation3 + $0x180] sm:$0xff]
        %v390 = vld [vmem:[#allocation3 + $0x188] sm:$0xff]
        %v391 = vld [vmem:[#allocation3 + $0x190] sm:$0xff]
        %v392 = vld [vmem:[#allocation3 + $0x198] sm:$0xff]
        %v393 = vld [vmem:[#allocation3 + $0x1a0] sm:$0xff]
        %v394 = vld [vmem:[#allocation3 + $0x1a8] sm:$0xff]
        %v395 = vld [vmem:[#allocation3 + $0x1b0] sm:$0xff]
        %v396 = vld [vmem:[#allocation3 + $0x1b8] sm:$0xff]
        %v397 = vld [vmem:[#allocation3 + $0x1c0] sm:$0xff]
        %v398 = vld [vmem:[#allocation3 + $0x1c8] sm:$0xff]
        %v399 = vld [vmem:[#allocation3 + $0x1d0] sm:$0xff]
        %v400 = vld [vmem:[#allocation3 + $0x1d8] sm:$0xff]
        %v401 = vld [vmem:[#allocation3 + $0x1e0] sm:$0xff]
        %v402 = vld [vmem:[#allocation3 + $0x1e8] sm:$0xff]
        %v403 = vld [vmem:[#allocation3 + $0x1f0] sm:$0xff]
        %v404 = vld [vmem:[#allocation3 + $0x1f8] sm:$0xff]
        %v405 = vld [vmem:[#allocation3 + $0x200] sm:$0xff]
        %v406 = vld [vmem:[#allocation3 + $0x208] sm:$0xff]
        %v407 = vld [vmem:[#allocation3 + $0x210] sm:$0xff]
        %v408 = vld [vmem:[#allocation3 + $0x218] sm:$0xff]
        %v409 = vld [vmem:[#allocation3 + $0x220] sm:$0xff]
        %v410 = vld [vmem:[#allocation3 + $0x228] sm:$0xff]
        %v411 = vld [vmem:[#allocation3 + $0x230] sm:$0xff]
        %v412 = vld [vmem:[#allocation3 + $0x238] sm:$0xff]
        %v413 = vld [vmem:[#allocation3 + $0x240] sm:$0xff]
        %v414 = vld [vmem:[#allocation3 + $0x248] sm:$0xff]
        %v415 = vld [vmem:[#allocation3 + $0x250] sm:$0xff]
        %v416 = vld [vmem:[#allocation3 + $0x258] sm:$0xff]
        %v417 = vld [vmem:[#allocation3 + $0x260] sm:$0xff]
        %v418 = vld [vmem:[#allocation3 + $0x268] sm:$0xff]
        %v419 = vld [vmem:[#allocation3 + $0x270] sm:$0xff]
        %v420 = vld [vmem:[#allocation3 + $0x278] sm:$0xff]
        %v421 = vld [vmem:[#allocation3 + $0x280] sm:$0xff]
        %v422 = vld [vmem:[#allocation3 + $0x288] sm:$0xff]
        %v423 = vld [vmem:[#allocation3 + $0x290] sm:$0xff]
        %v424 = vld [vmem:[#allocation3 + $0x298] sm:$0xff]
        %v425 = vld [vmem:[#allocation3 + $0x2a0] sm:$0xff]
        %v426 = vld [vmem:[#allocation3 + $0x2a8] sm:$0xff]
        %v427 = vld [vmem:[#allocation3 + $0x2b0] sm:$0xff]
        %v428 = vld [vmem:[#allocation3 + $0x2b8] sm:$0xff]
        %v429 = vld [vmem:[#allocation3 + $0x2c0] sm:$0xff]
        %v430 = vld [vmem:[#allocation3 + $0x2c8] sm:$0xff]
        %v431 = vld [vmem:[#allocation3 + $0x2d0] sm:$0xff]
        %v432 = vld [vmem:[#allocation3 + $0x2d8] sm:$0xff]
        %v433 = vld [vmem:[#allocation3 + $0x2e0] sm:$0xff]
        %v434 = vld [vmem:[#allocation3 + $0x2e8] sm:$0xff]
        %v435 = vld [vmem:[#allocation3 + $0x2f0] sm:$0xff]
        %v436 = vld [vmem:[#allocation3 + $0x2f8] sm:$0xff]
        %v437 = vld [vmem:[#allocation3 + $0x300] sm:$0xff]
        %v438 = vld [vmem:[#allocation3 + $0x308] sm:$0xff]
        %v439 = vld [vmem:[#allocation3 + $0x310] sm:$0xff]
        %v440 = vld [vmem:[#allocation3 + $0x318] sm:$0xff]
        %v441 = vld [vmem:[#allocation3 + $0x320] sm:$0xff]
        %v442 = vld [vmem:[#allocation3 + $0x328] sm:$0xff]
        %v443 = vld [vmem:[#allocation3 + $0x330] sm:$0xff]
        %v444 = vld [vmem:[#allocation3 + $0x338] sm:$0xff]
        %v445 = vld [vmem:[#allocation3 + $0x340] sm:$0xff]
        %v446 = vld [vmem:[#allocation3 + $0x348] sm:$0xff]
        %v447 = vld [vmem:[#allocation3 + $0x350] sm:$0xff]
        %v448 = vld [vmem:[#allocation3 + $0x358] sm:$0xff]
        %v449 = vld [vmem:[#allocation3 + $0x360] sm:$0xff]
        %v450 = vld [vmem:[#allocation3 + $0x368] sm:$0xff]
        %v451 = vld [vmem:[#allocation3 + $0x370] sm:$0xff]
        %v452 = vld [vmem:[#allocation3 + $0x378] sm:$0xff]
        %v453 = vld [vmem:[#allocation3 + $0x380] sm:$0xff]
        %v454 = vld [vmem:[#allocation3 + $0x388] sm:$0xff]
        %v455 = vld [vmem:[#allocation3 + $0x390] sm:$0xff]
        %v456 = vld [vmem:[#allocation3 + $0x398] sm:$0xff]
        %v457 = vld [vmem:[#allocation3 + $0x3a0] sm:$0xff]
        %v458 = vld [vmem:[#allocation3 + $0x3a8] sm:$0xff]
        %v459 = vld [vmem:[#allocation3 + $0x3b0] sm:$0xff]
        %v460 = vld [vmem:[#allocation3 + $0x3b8] sm:$0xff]
        %v461 = vld [vmem:[#allocation3 + $0x3c0] sm:$0xff]
        %v462 = vld [vmem:[#allocation3 + $0x3c8] sm:$0xff]
        %v463 = vld [vmem:[#allocation3 + $0x3d0] sm:$0xff]
        %v464 = vld [vmem:[#allocation3 + $0x3d8] sm:$0xff]
        %v465 = vld [vmem:[#allocation3 + $0x3e0] sm:$0xff]
        %v466 = vld [vmem:[#allocation3 + $0x3e8] sm:$0xff]
        %v467 = vld [vmem:[#allocation3 + $0x3f0] sm:$0xff]
        %v468 = vld [vmem:[#allocation3 + $0x3f8] sm:$0xff]
        %v469 = vld [vmem:[#allocation5] sm:$0xff]
        %v471 = vperm.slane %v469, 0
        %v472 = vperm.slane %v469, 1
        %v473 = vperm.slane %v469, 2
        %v474 = vperm.slane %v469, 3
        %v475 = vperm.slane %v469, 4
        %v476 = vperm.slane %v469, 5
        %v477 = vperm.slane %v469, 6
        %v478 = vperm.slane %v469, 7
        %v615 = vunpack.c.l.b16 %v341
        %v616 = vunpack.c.h.b16 %v341
        %v617 = vunpack.c.l.b16 %v342
        %v618 = vunpack.c.h.b16 %v342
        %v619 = vunpack.c.l.b16 %v343
        %v620 = vunpack.c.h.b16 %v343
        %v621 = vunpack.c.l.b16 %v344
        %v622 = vunpack.c.h.b16 %v344
        %v623 = vunpack.c.l.b16 %v345
        %v624 = vunpack.c.h.b16 %v345
        %v625 = vunpack.c.l.b16 %v346
        %v626 = vunpack.c.h.b16 %v346
        %v627 = vunpack.c.l.b16 %v347
        %v628 = vunpack.c.h.b16 %v347
        %v629 = vunpack.c.l.b16 %v348
        %v630 = vunpack.c.h.b16 %v348
        %v631 = vunpack.c.l.b16 %v349
        %v632 = vunpack.c.h.b16 %v349
        %v633 = vunpack.c.l.b16 %v350
        %v634 = vunpack.c.h.b16 %v350
        %v635 = vunpack.c.l.b16 %v351
        %v636 = vunpack.c.h.b16 %v351
        %v637 = vunpack.c.l.b16 %v352
        %v638 = vunpack.c.h.b16 %v352
        %v639 = vunpack.c.l.b16 %v353
        %v640 = vunpack.c.h.b16 %v353
        %v641 = vunpack.c.l.b16 %v354
        %v642 = vunpack.c.h.b16 %v354
        %v643 = vunpack.c.l.b16 %v355
        %v644 = vunpack.c.h.b16 %v355
        %v645 = vunpack.c.l.b16 %v356
        %v646 = vunpack.c.h.b16 %v356
        %v647 = vunpack.c.l.b16 %v357
        %v648 = vunpack.c.h.b16 %v357
        %v649 = vunpack.c.l.b16 %v358
        %v650 = vunpack.c.h.b16 %v358
        %v651 = vunpack.c.l.b16 %v359
        %v652 = vunpack.c.h.b16 %v359
        %v653 = vunpack.c.l.b16 %v360
        %v654 = vunpack.c.h.b16 %v360
        %v655 = vunpack.c.l.b16 %v361
        %v656 = vunpack.c.h.b16 %v361
        %v657 = vunpack.c.l.b16 %v362
        %v658 = vunpack.c.h.b16 %v362
        %v659 = vunpack.c.l.b16 %v363
        %v660 = vunpack.c.h.b16 %v363
        %v661 = vunpack.c.l.b16 %v364
        %v662 = vunpack.c.h.b16 %v364
        %v663 = vunpack.c.l.b16 %v365
        %v664 = vunpack.c.h.b16 %v365
        %v665 = vunpack.c.l.b16 %v366
        %v666 = vunpack.c.h.b16 %v366
        %v667 = vunpack.c.l.b16 %v367
        %v668 = vunpack.c.h.b16 %v367
        %v669 = vunpack.c.l.b16 %v368
        %v670 = vunpack.c.h.b16 %v368
        %v671 = vunpack.c.l.b16 %v369
        %v672 = vunpack.c.h.b16 %v369
        %v673 = vunpack.c.l.b16 %v370
        %v674 = vunpack.c.h.b16 %v370
        %v675 = vunpack.c.l.b16 %v371
        %v676 = vunpack.c.h.b16 %v371
        %v677 = vunpack.c.l.b16 %v372
        %v678 = vunpack.c.h.b16 %v372
        %v679 = vunpack.c.l.b16 %v373
        %v680 = vunpack.c.h.b16 %v373
        %v681 = vunpack.c.l.b16 %v374
        %v682 = vunpack.c.h.b16 %v374
        %v683 = vunpack.c.l.b16 %v375
        %v684 = vunpack.c.h.b16 %v375
        %v685 = vunpack.c.l.b16 %v376
        %v686 = vunpack.c.h.b16 %v376
        %v687 = vunpack.c.l.b16 %v377
        %v688 = vunpack.c.h.b16 %v377
        %v689 = vunpack.c.l.b16 %v378
        %v690 = vunpack.c.h.b16 %v378
        %v691 = vunpack.c.l.b16 %v379
        %v692 = vunpack.c.h.b16 %v379
        %v693 = vunpack.c.l.b16 %v380
        %v694 = vunpack.c.h.b16 %v380
        %v695 = vunpack.c.l.b16 %v381
        %v696 = vunpack.c.h.b16 %v381
        %v697 = vunpack.c.l.b16 %v382
        %v698 = vunpack.c.h.b16 %v382
        %v699 = vunpack.c.l.b16 %v383
        %v700 = vunpack.c.h.b16 %v383
        %v701 = vunpack.c.l.b16 %v384
        %v702 = vunpack.c.h.b16 %v384
        %v703 = vunpack.c.l.b16 %v385
        %v704 = vunpack.c.h.b16 %v385
        %v705 = vunpack.c.l.b16 %v386
        %v706 = vunpack.c.h.b16 %v386
        %v707 = vunpack.c.l.b16 %v387
        %v708 = vunpack.c.h.b16 %v387
        %v709 = vunpack.c.l.b16 %v388
        %v710 = vunpack.c.h.b16 %v388
        %v711 = vunpack.c.l.b16 %v389
        %v712 = vunpack.c.h.b16 %v389
        %v713 = vunpack.c.l.b16 %v390
        %v714 = vunpack.c.h.b16 %v390
        %v715 = vunpack.c.l.b16 %v391
        %v716 = vunpack.c.h.b16 %v391
        %v717 = vunpack.c.l.b16 %v392
        %v718 = vunpack.c.h.b16 %v392
        %v719 = vunpack.c.l.b16 %v393
        %v720 = vunpack.c.h.b16 %v393
        %v721 = vunpack.c.l.b16 %v394
        %v722 = vunpack.c.h.b16 %v394
        %v723 = vunpack.c.l.b16 %v395
        %v724 = vunpack.c.h.b16 %v395
        %v725 = vunpack.c.l.b16 %v396
        %v726 = vunpack.c.h.b16 %v396
        %v727 = vunpack.c.l.b16 %v397
        %v728 = vunpack.c.h.b16 %v397
        %v729 = vunpack.c.l.b16 %v398
        %v730 = vunpack.c.h.b16 %v398
        %v731 = vunpack.c.l.b16 %v399
        %v732 = vunpack.c.h.b16 %v399
        %v733 = vunpack.c.l.b16 %v400
        %v734 = vunpack.c.h.b16 %v400
        %v735 = vunpack.c.l.b16 %v401
        %v736 = vunpack.c.h.b16 %v401
        %v737 = vunpack.c.l.b16 %v402
        %v738 = vunpack.c.h.b16 %v402
        %v739 = vunpack.c.l.b16 %v403
        %v740 = vunpack.c.h.b16 %v403
        %v741 = vunpack.c.l.b16 %v404
        %v742 = vunpack.c.h.b16 %v404
        %v743 = vunpack.c.l.b16 %v405
        %v744 = vunpack.c.h.b16 %v405
        %v745 = vunpack.c.l.b16 %v406
        %v746 = vunpack.c.h.b16 %v406
        %v747 = vunpack.c.l.b16 %v407
        %v748 = vunpack.c.h.b16 %v407
        %v749 = vunpack.c.l.b16 %v408
        %v750 = vunpack.c.h.b16 %v408
        %v751 = vunpack.c.l.b16 %v409
        %v752 = vunpack.c.h.b16 %v409
        %v753 = vunpack.c.l.b16 %v410
        %v754 = vunpack.c.h.b16 %v410
        %v755 = vunpack.c.l.b16 %v411
        %v756 = vunpack.c.h.b16 %v411
        %v757 = vunpack.c.l.b16 %v412
        %v758 = vunpack.c.h.b16 %v412
        %v759 = vunpack.c.l.b16 %v413
        %v760 = vunpack.c.h.b16 %v413
        %v761 = vunpack.c.l.b16 %v414
        %v762 = vunpack.c.h.b16 %v414
        %v763 = vunpack.c.l.b16 %v415
        %v764 = vunpack.c.h.b16 %v415
        %v765 = vunpack.c.l.b16 %v416
        %v766 = vunpack.c.h.b16 %v416
        %v767 = vunpack.c.l.b16 %v417
        %v768 = vunpack.c.h.b16 %v417
        %v769 = vunpack.c.l.b16 %v418
        %v770 = vunpack.c.h.b16 %v418
        %v771 = vunpack.c.l.b16 %v419
        %v772 = vunpack.c.h.b16 %v419
        %v773 = vunpack.c.l.b16 %v420
        %v774 = vunpack.c.h.b16 %v420
        %v775 = vunpack.c.l.b16 %v421
        %v776 = vunpack.c.h.b16 %v421
        %v777 = vunpack.c.l.b16 %v422
        %v778 = vunpack.c.h.b16 %v422
        %v779 = vunpack.c.l.b16 %v423
        %v780 = vunpack.c.h.b16 %v423
        %v781 = vunpack.c.l.b16 %v424
        %v782 = vunpack.c.h.b16 %v424
        %v783 = vunpack.c.l.b16 %v425
        %v784 = vunpack.c.h.b16 %v425
        %v785 = vunpack.c.l.b16 %v426
        %v786 = vunpack.c.h.b16 %v426
        %v787 = vunpack.c.l.b16 %v427
        %v788 = vunpack.c.h.b16 %v427
        %v789 = vunpack.c.l.b16 %v428
        %v790 = vunpack.c.h.b16 %v428
        %v791 = vunpack.c.l.b16 %v429
        %v792 = vunpack.c.h.b16 %v429
        %v793 = vunpack.c.l.b16 %v430
        %v794 = vunpack.c.h.b16 %v430
        %v795 = vunpack.c.l.b16 %v431
        %v796 = vunpack.c.h.b16 %v431
        %v797 = vunpack.c.l.b16 %v432
        %v798 = vunpack.c.h.b16 %v432
        %v799 = vunpack.c.l.b16 %v433
        %v800 = vunpack.c.h.b16 %v433
        %v801 = vunpack.c.l.b16 %v434
        %v802 = vunpack.c.h.b16 %v434
        %v803 = vunpack.c.l.b16 %v435
        %v804 = vunpack.c.h.b16 %v435
        %v805 = vunpack.c.l.b16 %v436
        %v806 = vunpack.c.h.b16 %v436
        %v807 = vunpack.c.l.b16 %v437
        %v808 = vunpack.c.h.b16 %v437
        %v809 = vunpack.c.l.b16 %v438
        %v810 = vunpack.c.h.b16 %v438
        %v811 = vunpack.c.l.b16 %v439
        %v812 = vunpack.c.h.b16 %v439
        %v813 = vunpack.c.l.b16 %v440
        %v814 = vunpack.c.h.b16 %v440
        %v815 = vunpack.c.l.b16 %v441
        %v816 = vunpack.c.h.b16 %v441
        %v817 = vunpack.c.l.b16 %v442
        %v818 = vunpack.c.h.b16 %v442
        %v819 = vunpack.c.l.b16 %v443
        %v820 = vunpack.c.h.b16 %v443
        %v821 = vunpack.c.l.b16 %v444
        %v822 = vunpack.c.h.b16 %v444
        %v823 = vunpack.c.l.b16 %v445
        %v824 = vunpack.c.h.b16 %v445
        %v825 = vunpack.c.l.b16 %v446
        %v826 = vunpack.c.h.b16 %v446
        %v827 = vunpack.c.l.b16 %v447
        %v828 = vunpack.c.h.b16 %v447
        %v829 = vunpack.c.l.b16 %v448
        %v830 = vunpack.c.h.b16 %v448
        %v831 = vunpack.c.l.b16 %v449
        %v832 = vunpack.c.h.b16 %v449
        %v833 = vunpack.c.l.b16 %v450
        %v834 = vunpack.c.h.b16 %v450
        %v835 = vunpack.c.l.b16 %v451
        %v836 = vunpack.c.h.b16 %v451
        %v837 = vunpack.c.l.b16 %v452
        %v838 = vunpack.c.h.b16 %v452
        %v839 = vunpack.c.l.b16 %v453
        %v840 = vunpack.c.h.b16 %v453
        %v841 = vunpack.c.l.b16 %v454
        %v842 = vunpack.c.h.b16 %v454
        %v843 = vunpack.c.l.b16 %v455
        %v844 = vunpack.c.h.b16 %v455
        %v845 = vunpack.c.l.b16 %v456
        %v846 = vunpack.c.h.b16 %v456
        %v847 = vunpack.c.l.b16 %v457
        %v848 = vunpack.c.h.b16 %v457
        %v849 = vunpack.c.l.b16 %v458
        %v850 = vunpack.c.h.b16 %v458
        %v851 = vunpack.c.l.b16 %v459
        %v852 = vunpack.c.h.b16 %v459
        %v853 = vunpack.c.l.b16 %v460
        %v854 = vunpack.c.h.b16 %v460
        %v855 = vunpack.c.l.b16 %v461
        %v856 = vunpack.c.h.b16 %v461
        %v857 = vunpack.c.l.b16 %v462
        %v858 = vunpack.c.h.b16 %v462
        %v859 = vunpack.c.l.b16 %v463
        %v860 = vunpack.c.h.b16 %v463
        %v861 = vunpack.c.l.b16 %v464
        %v862 = vunpack.c.h.b16 %v464
        %v863 = vunpack.c.l.b16 %v465
        %v864 = vunpack.c.h.b16 %v465
        %v865 = vunpack.c.l.b16 %v466
        %v866 = vunpack.c.h.b16 %v466
        %v867 = vunpack.c.l.b16 %v467
        %v868 = vunpack.c.h.b16 %v467
        %v869 = vunpack.c.l.b16 %v468
        %v870 = vunpack.c.h.b16 %v468
        %v871 = vpack.c.b16 %v623, %v615
        %v872 = vpack.c.b16 %v624, %v616
        %v873 = vpack.c.b16 %v625, %v617
        %v874 = vpack.c.b16 %v626, %v618
        %v875 = vpack.c.b16 %v627, %v619
        %v876 = vpack.c.b16 %v628, %v620
        %v877 = vpack.c.b16 %v629, %v621
        %v878 = vpack.c.b16 %v630, %v622
        %v879 = vpack.c.b16 %v639, %v631
        %v880 = vpack.c.b16 %v640, %v632
        %v881 = vpack.c.b16 %v641, %v633
        %v882 = vpack.c.b16 %v642, %v634
        %v883 = vpack.c.b16 %v643, %v635
        %v884 = vpack.c.b16 %v644, %v636
        %v885 = vpack.c.b16 %v645, %v637
        %v886 = vpack.c.b16 %v646, %v638
        %v887 = vpack.c.b16 %v655, %v647
        %v888 = vpack.c.b16 %v656, %v648
        %v889 = vpack.c.b16 %v657, %v649
        %v890 = vpack.c.b16 %v658, %v650
        %v891 = vpack.c.b16 %v659, %v651
        %v892 = vpack.c.b16 %v660, %v652
        %v893 = vpack.c.b16 %v661, %v653
        %v894 = vpack.c.b16 %v662, %v654
        %v895 = vpack.c.b16 %v671, %v663
        %v896 = vpack.c.b16 %v672, %v664
        %v897 = vpack.c.b16 %v673, %v665
        %v898 = vpack.c.b16 %v674, %v666
        %v899 = vpack.c.b16 %v675, %v667
        %v900 = vpack.c.b16 %v676, %v668
        %v901 = vpack.c.b16 %v677, %v669
        %v902 = vpack.c.b16 %v678, %v670
        %v903 = vpack.c.b16 %v687, %v679
        %v904 = vpack.c.b16 %v688, %v680
        %v905 = vpack.c.b16 %v689, %v681
        %v906 = vpack.c.b16 %v690, %v682
        %v907 = vpack.c.b16 %v691, %v683
        %v908 = vpack.c.b16 %v692, %v684
        %v909 = vpack.c.b16 %v693, %v685
        %v910 = vpack.c.b16 %v694, %v686
        %v911 = vpack.c.b16 %v703, %v695
        %v912 = vpack.c.b16 %v704, %v696
        %v913 = vpack.c.b16 %v705, %v697
        %v914 = vpack.c.b16 %v706, %v698
        %v915 = vpack.c.b16 %v707, %v699
        %v916 = vpack.c.b16 %v708, %v700
        %v917 = vpack.c.b16 %v709, %v701
        %v918 = vpack.c.b16 %v710, %v702
        %v919 = vpack.c.b16 %v719, %v711
        %v920 = vpack.c.b16 %v720, %v712
        %v921 = vpack.c.b16 %v721, %v713
        %v922 = vpack.c.b16 %v722, %v714
        %v923 = vpack.c.b16 %v723, %v715
        %v924 = vpack.c.b16 %v724, %v716
        %v925 = vpack.c.b16 %v725, %v717
        %v926 = vpack.c.b16 %v726, %v718
        %v927 = vpack.c.b16 %v735, %v727
        %v928 = vpack.c.b16 %v736, %v728
        %v929 = vpack.c.b16 %v737, %v729
        %v930 = vpack.c.b16 %v738, %v730
        %v931 = vpack.c.b16 %v739, %v731
        %v932 = vpack.c.b16 %v740, %v732
        %v933 = vpack.c.b16 %v741, %v733
        %v934 = vpack.c.b16 %v742, %v734
        %v935 = vpack.c.b16 %v751, %v743
        %v936 = vpack.c.b16 %v752, %v744
        %v937 = vpack.c.b16 %v753, %v745
        %v938 = vpack.c.b16 %v754, %v746
        %v939 = vpack.c.b16 %v755, %v747
        %v940 = vpack.c.b16 %v756, %v748
        %v941 = vpack.c.b16 %v757, %v749
        %v942 = vpack.c.b16 %v758, %v750
        %v943 = vpack.c.b16 %v767, %v759
        %v944 = vpack.c.b16 %v768, %v760
        %v945 = vpack.c.b16 %v769, %v761
        %v946 = vpack.c.b16 %v770, %v762
        %v947 = vpack.c.b16 %v771, %v763
        %v948 = vpack.c.b16 %v772, %v764
        %v949 = vpack.c.b16 %v773, %v765
        %v950 = vpack.c.b16 %v774, %v766
        %v951 = vpack.c.b16 %v783, %v775
        %v952 = vpack.c.b16 %v784, %v776
        %v953 = vpack.c.b16 %v785, %v777
        %v954 = vpack.c.b16 %v786, %v778
        %v955 = vpack.c.b16 %v787, %v779
        %v956 = vpack.c.b16 %v788, %v780
        %v957 = vpack.c.b16 %v789, %v781
        %v958 = vpack.c.b16 %v790, %v782
        %v959 = vpack.c.b16 %v799, %v791
        %v960 = vpack.c.b16 %v800, %v792
        %v961 = vpack.c.b16 %v801, %v793
        %v962 = vpack.c.b16 %v802, %v794
        %v963 = vpack.c.b16 %v803, %v795
        %v964 = vpack.c.b16 %v804, %v796
        %v965 = vpack.c.b16 %v805, %v797
        %v966 = vpack.c.b16 %v806, %v798
        %v967 = vpack.c.b16 %v815, %v807
        %v968 = vpack.c.b16 %v816, %v808
        %v969 = vpack.c.b16 %v817, %v809
        %v970 = vpack.c.b16 %v818, %v810
        %v971 = vpack.c.b16 %v819, %v811
        %v972 = vpack.c.b16 %v820, %v812
        %v973 = vpack.c.b16 %v821, %v813
        %v974 = vpack.c.b16 %v822, %v814
        %v975 = vpack.c.b16 %v831, %v823
        %v976 = vpack.c.b16 %v832, %v824
        %v977 = vpack.c.b16 %v833, %v825
        %v978 = vpack.c.b16 %v834, %v826
        %v979 = vpack.c.b16 %v835, %v827
        %v980 = vpack.c.b16 %v836, %v828
        %v981 = vpack.c.b16 %v837, %v829
        %v982 = vpack.c.b16 %v838, %v830
        %v983 = vpack.c.b16 %v847, %v839
        %v984 = vpack.c.b16 %v848, %v840
        %v985 = vpack.c.b16 %v849, %v841
        %v986 = vpack.c.b16 %v850, %v842
        %v987 = vpack.c.b16 %v851, %v843
        %v988 = vpack.c.b16 %v852, %v844
        %v989 = vpack.c.b16 %v853, %v845
        %v990 = vpack.c.b16 %v854, %v846
        %v991 = vpack.c.b16 %v863, %v855
        %v992 = vpack.c.b16 %v864, %v856
        %v993 = vpack.c.b16 %v865, %v857
        %v994 = vpack.c.b16 %v866, %v858
        %v995 = vpack.c.b16 %v867, %v859
        %v996 = vpack.c.b16 %v868, %v860
        %v997 = vpack.c.b16 %v869, %v861
        %v998 = vpack.c.b16 %v870, %v862
        %1127 = vmatpush.bf16.msra.mxu0 %v927
        %1128 = vmatpush.bf16.msra.mxu0 %v919
        %1129 = vmatpush.bf16.msra.mxu0 %v911
        %1130 = vmatpush.bf16.msra.mxu0 %v903
        %1131 = vmatpush.bf16.msra.mxu0 %v895
        %1132 = vmatpush.bf16.msra.mxu0 %v887
        %1133 = vmatpush.bf16.msra.mxu0 %v879
        %1134 = vmatpush.bf16.msra.mxu0 %v871
        %1135 = vmatmul.bf16.gmra.mxu0 %v339
        %v1136 = vpop.f32.mrf.mxu0
        %v1137 = vadd.f32 %v471, %v1136
        %v1138 = vpop.f32.mrf.mxu0
        %v1139 = vadd.f32 %v471, %v1138
        %1140 = vdwg.mxu0
        %1141 = vmatpush.bf16.msra.mxu0 %v991
        %1142 = vmatpush.bf16.msra.mxu0 %v983
        %1143 = vmatpush.bf16.msra.mxu0 %v975
        %1144 = vmatpush.bf16.msra.mxu0 %v967
        %1145 = vmatpush.bf16.msra.mxu0 %v959
        %1146 = vmatpush.bf16.msra.mxu0 %v951
        %1147 = vmatpush.bf16.msra.mxu0 %v943
        %1148 = vmatpush.bf16.msra.mxu0 %v935
        %1149 = vmatmul.bf16.gmra.mxu0 %v340
        %v1150 = vpop.f32.mrf.mxu0
        %v1151 = vadd.f32 %v1137, %v1150
        %v1152 = vpop.f32.mrf.mxu0
        %v1153 = vadd.f32 %v1139, %v1152
        %1154 = vdwg.mxu0
        %1155 = vmatpush.bf16.msra.mxu0 %v928
        %1156 = vmatpush.bf16.msra.mxu0 %v920
        %1157 = vmatpush.bf16.msra.mxu0 %v912
        %1158 = vmatpush.bf16.msra.mxu0 %v904
        %1159 = vmatpush.bf16.msra.mxu0 %v896
        %1160 = vmatpush.bf16.msra.mxu0 %v888
        %1161 = vmatpush.bf16.msra.mxu0 %v880
        %1162 = vmatpush.bf16.msra.mxu0 %v872
        %1163 = vmatmul.bf16.gmra.mxu0 %v339
        %v1164 = vpop.f32.mrf.mxu0
        %v1165 = vadd.f32 %v472, %v1164
        %v1166 = vpop.f32.mrf.mxu0
        %v1167 = vadd.f32 %v472, %v1166
        %1168 = vdwg.mxu0
        %1169 = vmatpush.bf16.msra.mxu0 %v992
        %1170 = vmatpush.bf16.msra.mxu0 %v984
        %1171 = vmatpush.bf16.msra.mxu0 %v976
        %1172 = vmatpush.bf16.msra.mxu0 %v968
        %1173 = vmatpush.bf16.msra.mxu0 %v960
        %1174 = vmatpush.bf16.msra.mxu0 %v952
        %1175 = vmatpush.bf16.msra.mxu0 %v944
        %1176 = vmatpush.bf16.msra.mxu0 %v936
        %1177 = vmatmul.bf16.gmra.mxu0 %v340
        %v1178 = vpop.f32.mrf.mxu0
        %v1179 = vadd.f32 %v1165, %v1178
        %v1180 = vpop.f32.mrf.mxu0
        %v1181 = vadd.f32 %v1167, %v1180
        %1182 = vdwg.mxu0
        %1183 = vmatpush.bf16.msra.mxu0 %v929
        %1184 = vmatpush.bf16.msra.mxu0 %v921
        %1185 = vmatpush.bf16.msra.mxu0 %v913
        %1186 = vmatpush.bf16.msra.mxu0 %v905
        %1187 = vmatpush.bf16.msra.mxu0 %v897
        %1188 = vmatpush.bf16.msra.mxu0 %v889
        %1189 = vmatpush.bf16.msra.mxu0 %v881
        %1190 = vmatpush.bf16.msra.mxu0 %v873
        %1191 = vmatmul.bf16.gmra.mxu0 %v339
        %v1192 = vpop.f32.mrf.mxu0
        %v1193 = vadd.f32 %v473, %v1192
        %v1194 = vpop.f32.mrf.mxu0
        %v1195 = vadd.f32 %v473, %v1194
        %1196 = vdwg.mxu0
        %1197 = vmatpush.bf16.msra.mxu0 %v993
        %1198 = vmatpush.bf16.msra.mxu0 %v985
        %1199 = vmatpush.bf16.msra.mxu0 %v977
        %1200 = vmatpush.bf16.msra.mxu0 %v969
        %1201 = vmatpush.bf16.msra.mxu0 %v961
        %1202 = vmatpush.bf16.msra.mxu0 %v953
        %1203 = vmatpush.bf16.msra.mxu0 %v945
        %1204 = vmatpush.bf16.msra.mxu0 %v937
        %1205 = vmatmul.bf16.gmra.mxu0 %v340
        %v1206 = vpop.f32.mrf.mxu0
        %v1207 = vadd.f32 %v1193, %v1206
        %v1208 = vpop.f32.mrf.mxu0
        %v1209 = vadd.f32 %v1195, %v1208
        %1210 = vdwg.mxu0
        %1211 = vmatpush.bf16.msra.mxu0 %v930
        %1212 = vmatpush.bf16.msra.mxu0 %v922
        %1213 = vmatpush.bf16.msra.mxu0 %v914
        %1214 = vmatpush.bf16.msra.mxu0 %v906
        %1215 = vmatpush.bf16.msra.mxu0 %v898
        %1216 = vmatpush.bf16.msra.mxu0 %v890
        %1217 = vmatpush.bf16.msra.mxu0 %v882
        %1218 = vmatpush.bf16.msra.mxu0 %v874
        %1219 = vmatmul.bf16.gmra.mxu0 %v339
        %v1220 = vpop.f32.mrf.mxu0
        %v1221 = vadd.f32 %v474, %v1220
        %v1222 = vpop.f32.mrf.mxu0
        %v1223 = vadd.f32 %v474, %v1222
        %1224 = vdwg.mxu0
        %1225 = vmatpush.bf16.msra.mxu0 %v994
        %1226 = vmatpush.bf16.msra.mxu0 %v986
        %1227 = vmatpush.bf16.msra.mxu0 %v978
        %1228 = vmatpush.bf16.msra.mxu0 %v970
        %1229 = vmatpush.bf16.msra.mxu0 %v962
        %1230 = vmatpush.bf16.msra.mxu0 %v954
        %1231 = vmatpush.bf16.msra.mxu0 %v946
        %1232 = vmatpush.bf16.msra.mxu0 %v938
        %1233 = vmatmul.bf16.gmra.mxu0 %v340
        %v1234 = vpop.f32.mrf.mxu0
        %v1235 = vadd.f32 %v1221, %v1234
        %v1236 = vpop.f32.mrf.mxu0
        %v1237 = vadd.f32 %v1223, %v1236
        %1238 = vdwg.mxu0
        %1239 = vmatpush.bf16.msra.mxu0 %v931
        %1240 = vmatpush.bf16.msra.mxu0 %v923
        %1241 = vmatpush.bf16.msra.mxu0 %v915
        %1242 = vmatpush.bf16.msra.mxu0 %v907
        %1243 = vmatpush.bf16.msra.mxu0 %v899
        %1244 = vmatpush.bf16.msra.mxu0 %v891
        %1245 = vmatpush.bf16.msra.mxu0 %v883
        %1246 = vmatpush.bf16.msra.mxu0 %v875
        %1247 = vmatmul.bf16.gmra.mxu0 %v339
        %v1248 = vpop.f32.mrf.mxu0
        %v1249 = vadd.f32 %v475, %v1248
        %v1250 = vpop.f32.mrf.mxu0
        %v1251 = vadd.f32 %v475, %v1250
        %1252 = vdwg.mxu0
        %1253 = vmatpush.bf16.msra.mxu0 %v995
        %1254 = vmatpush.bf16.msra.mxu0 %v987
        %1255 = vmatpush.bf16.msra.mxu0 %v979
        %1256 = vmatpush.bf16.msra.mxu0 %v971
        %1257 = vmatpush.bf16.msra.mxu0 %v963
        %1258 = vmatpush.bf16.msra.mxu0 %v955
        %1259 = vmatpush.bf16.msra.mxu0 %v947
        %1260 = vmatpush.bf16.msra.mxu0 %v939
        %1261 = vmatmul.bf16.gmra.mxu0 %v340
        %v1262 = vpop.f32.mrf.mxu0
        %v1263 = vadd.f32 %v1249, %v1262
        %v1264 = vpop.f32.mrf.mxu0
        %v1265 = vadd.f32 %v1251, %v1264
        %1266 = vdwg.mxu0
        %1267 = vmatpush.bf16.msra.mxu0 %v932
        %1268 = vmatpush.bf16.msra.mxu0 %v924
        %1269 = vmatpush.bf16.msra.mxu0 %v916
        %1270 = vmatpush.bf16.msra.mxu0 %v908
        %1271 = vmatpush.bf16.msra.mxu0 %v900
        %1272 = vmatpush.bf16.msra.mxu0 %v892
        %1273 = vmatpush.bf16.msra.mxu0 %v884
        %1274 = vmatpush.bf16.msra.mxu0 %v876
        %1275 = vmatmul.bf16.gmra.mxu0 %v339
        %v1276 = vpop.f32.mrf.mxu0
        %v1277 = vadd.f32 %v476, %v1276
        %v1278 = vpop.f32.mrf.mxu0
        %v1279 = vadd.f32 %v476, %v1278
        %1280 = vdwg.mxu0
        %1281 = vmatpush.bf16.msra.mxu0 %v996
        %1282 = vmatpush.bf16.msra.mxu0 %v988
        %1283 = vmatpush.bf16.msra.mxu0 %v980
        %1284 = vmatpush.bf16.msra.mxu0 %v972
        %1285 = vmatpush.bf16.msra.mxu0 %v964
        %1286 = vmatpush.bf16.msra.mxu0 %v956
        %1287 = vmatpush.bf16.msra.mxu0 %v948
        %1288 = vmatpush.bf16.msra.mxu0 %v940
        %1289 = vmatmul.bf16.gmra.mxu0 %v340
        %v1290 = vpop.f32.mrf.mxu0
        %v1291 = vadd.f32 %v1277, %v1290
        %v1292 = vpop.f32.mrf.mxu0
        %v1293 = vadd.f32 %v1279, %v1292
        %1294 = vdwg.mxu0
        %1295 = vmatpush.bf16.msra.mxu0 %v933
        %1296 = vmatpush.bf16.msra.mxu0 %v925
        %1297 = vmatpush.bf16.msra.mxu0 %v917
        %1298 = vmatpush.bf16.msra.mxu0 %v909
        %1299 = vmatpush.bf16.msra.mxu0 %v901
        %1300 = vmatpush.bf16.msra.mxu0 %v893
        %1301 = vmatpush.bf16.msra.mxu0 %v885
        %1302 = vmatpush.bf16.msra.mxu0 %v877
        %1303 = vmatmul.bf16.gmra.mxu0 %v339
        %v1304 = vpop.f32.mrf.mxu0
        %v1305 = vadd.f32 %v477, %v1304
        %v1306 = vpop.f32.mrf.mxu0
        %v1307 = vadd.f32 %v477, %v1306
        %1308 = vdwg.mxu0
        %1309 = vmatpush.bf16.msra.mxu0 %v997
        %1310 = vmatpush.bf16.msra.mxu0 %v989
        %1311 = vmatpush.bf16.msra.mxu0 %v981
        %1312 = vmatpush.bf16.msra.mxu0 %v973
        %1313 = vmatpush.bf16.msra.mxu0 %v965
        %1314 = vmatpush.bf16.msra.mxu0 %v957
        %1315 = vmatpush.bf16.msra.mxu0 %v949
        %1316 = vmatpush.bf16.msra.mxu0 %v941
        %1317 = vmatmul.bf16.gmra.mxu0 %v340
        %v1318 = vpop.f32.mrf.mxu0
        %v1319 = vadd.f32 %v1305, %v1318
        %v1320 = vpop.f32.mrf.mxu0
        %v1321 = vadd.f32 %v1307, %v1320
        %1322 = vdwg.mxu0
        %1323 = vmatpush.bf16.msra.mxu0 %v934
        %1324 = vmatpush.bf16.msra.mxu0 %v926
        %1325 = vmatpush.bf16.msra.mxu0 %v918
        %1326 = vmatpush.bf16.msra.mxu0 %v910
        %1327 = vmatpush.bf16.msra.mxu0 %v902
        %1328 = vmatpush.bf16.msra.mxu0 %v894
        %1329 = vmatpush.bf16.msra.mxu0 %v886
        %1330 = vmatpush.bf16.msra.mxu0 %v878
        %1331 = vmatmul.bf16.gmra.mxu0 %v339
        %v1332 = vpop.f32.mrf.mxu0
        %v1333 = vadd.f32 %v478, %v1332
        %v1334 = vpop.f32.mrf.mxu0
        %v1335 = vadd.f32 %v478, %v1334
        %1336 = vdwg.mxu0
        %1337 = vmatpush.bf16.msra.mxu0 %v998
        %1338 = vmatpush.bf16.msra.mxu0 %v990
        %1339 = vmatpush.bf16.msra.mxu0 %v982
        %1340 = vmatpush.bf16.msra.mxu0 %v974
        %1341 = vmatpush.bf16.msra.mxu0 %v966
        %1342 = vmatpush.bf16.msra.mxu0 %v958
        %1343 = vmatpush.bf16.msra.mxu0 %v950
        %1344 = vmatpush.bf16.msra.mxu0 %v942
        %1345 = vmatmul.bf16.gmra.mxu0 %v340
        %v1346 = vpop.f32.mrf.mxu0
        %v1347 = vadd.f32 %v1333, %v1346
        %v1348 = vpop.f32.mrf.mxu0
        %v1349 = vadd.f32 %v1335, %v1348
        %1350 = vdwg.mxu0
        %v1351 = vpack.c.bf16 %v1153, %v1151
        %v1352 = vpack.c.bf16 %v1181, %v1179
        %v1353 = vpack.c.bf16 %v1209, %v1207
        %v1354 = vpack.c.bf16 %v1237, %v1235
        %v1355 = vpack.c.bf16 %v1265, %v1263
        %v1356 = vpack.c.bf16 %v1293, %v1291
        %v1357 = vpack.c.bf16 %v1321, %v1319
        %v1358 = vpack.c.bf16 %v1349, %v1347
        %v1359 = vld [vmem:[#allocation7] sm:$0xf]
        %v1360 = vld [vmem:[#allocation7 + $0x4] sm:$0xf]
        %v1361 = vld [vmem:[#allocation7 + $0x8] sm:$0xf]
        %v1362 = vld [vmem:[#allocation7 + $0xc] sm:$0xf]
        %v1363 = vld [vmem:[#allocation7 + $0x10] sm:$0xf]
        %v1364 = vld [vmem:[#allocation7 + $0x14] sm:$0xf]
        %v1365 = vld [vmem:[#allocation7 + $0x18] sm:$0xf]
        %v1366 = vld [vmem:[#allocation7 + $0x1c] sm:$0xf]
        %v1367 = vld [vmem:[#allocation7 + $0x20] sm:$0xf]
        %v1368 = vld [vmem:[#allocation7 + $0x24] sm:$0xf]
        %v1369 = vld [vmem:[#allocation7 + $0x28] sm:$0xf]
        %v1370 = vld [vmem:[#allocation7 + $0x2c] sm:$0xf]
        %v1371 = vld [vmem:[#allocation7 + $0x30] sm:$0xf]
        %v1372 = vld [vmem:[#allocation7 + $0x34] sm:$0xf]
        %v1373 = vld [vmem:[#allocation7 + $0x38] sm:$0xf]
        %v1374 = vld [vmem:[#allocation7 + $0x3c] sm:$0xf]
        %v1375 = vld [vmem:[#allocation7 + $0x40] sm:$0xf]
        %v1376 = vld [vmem:[#allocation7 + $0x44] sm:$0xf]
        %v1377 = vld [vmem:[#allocation7 + $0x48] sm:$0xf]
        %v1378 = vld [vmem:[#allocation7 + $0x4c] sm:$0xf]
        %v1379 = vld [vmem:[#allocation7 + $0x50] sm:$0xf]
        %v1380 = vld [vmem:[#allocation7 + $0x54] sm:$0xf]
        %v1381 = vld [vmem:[#allocation7 + $0x58] sm:$0xf]
        %v1382 = vld [vmem:[#allocation7 + $0x5c] sm:$0xf]
        %v1383 = vld [vmem:[#allocation7 + $0x60] sm:$0xf]
        %v1384 = vld [vmem:[#allocation7 + $0x64] sm:$0xf]
        %v1385 = vld [vmem:[#allocation7 + $0x68] sm:$0xf]
        %v1386 = vld [vmem:[#allocation7 + $0x6c] sm:$0xf]
        %v1387 = vld [vmem:[#allocation7 + $0x70] sm:$0xf]
        %v1388 = vld [vmem:[#allocation7 + $0x74] sm:$0xf]
        %v1389 = vld [vmem:[#allocation7 + $0x78] sm:$0xf]
        %v1390 = vld [vmem:[#allocation7 + $0x7c] sm:$0xf]
        %v1391 = vld [vmem:[#allocation7 + $0x80] sm:$0xf]
        %v1392 = vld [vmem:[#allocation7 + $0x84] sm:$0xf]
        %v1393 = vld [vmem:[#allocation7 + $0x88] sm:$0xf]
        %v1394 = vld [vmem:[#allocation7 + $0x8c] sm:$0xf]
        %v1395 = vld [vmem:[#allocation7 + $0x90] sm:$0xf]
        %v1396 = vld [vmem:[#allocation7 + $0x94] sm:$0xf]
        %v1397 = vld [vmem:[#allocation7 + $0x98] sm:$0xf]
        %v1398 = vld [vmem:[#allocation7 + $0x9c] sm:$0xf]
        %v1399 = vld [vmem:[#allocation7 + $0xa0] sm:$0xf]
        %v1400 = vld [vmem:[#allocation7 + $0xa4] sm:$0xf]
        %v1401 = vld [vmem:[#allocation7 + $0xa8] sm:$0xf]
        %v1402 = vld [vmem:[#allocation7 + $0xac] sm:$0xf]
        %v1403 = vld [vmem:[#allocation7 + $0xb0] sm:$0xf]
        %v1404 = vld [vmem:[#allocation7 + $0xb4] sm:$0xf]
        %v1405 = vld [vmem:[#allocation7 + $0xb8] sm:$0xf]
        %v1406 = vld [vmem:[#allocation7 + $0xbc] sm:$0xf]
        %v1407 = vld [vmem:[#allocation7 + $0xc0] sm:$0xf]
        %v1408 = vld [vmem:[#allocation7 + $0xc4] sm:$0xf]
        %v1409 = vld [vmem:[#allocation7 + $0xc8] sm:$0xf]
        %v1410 = vld [vmem:[#allocation7 + $0xcc] sm:$0xf]
        %v1411 = vld [vmem:[#allocation7 + $0xd0] sm:$0xf]
        %v1412 = vld [vmem:[#allocation7 + $0xd4] sm:$0xf]
        %v1413 = vld [vmem:[#allocation7 + $0xd8] sm:$0xf]
        %v1414 = vld [vmem:[#allocation7 + $0xdc] sm:$0xf]
        %v1415 = vld [vmem:[#allocation7 + $0xe0] sm:$0xf]
        %v1416 = vld [vmem:[#allocation7 + $0xe4] sm:$0xf]
        %v1417 = vld [vmem:[#allocation7 + $0xe8] sm:$0xf]
        %v1418 = vld [vmem:[#allocation7 + $0xec] sm:$0xf]
        %v1419 = vld [vmem:[#allocation7 + $0xf0] sm:$0xf]
        %v1420 = vld [vmem:[#allocation7 + $0xf4] sm:$0xf]
        %v1421 = vld [vmem:[#allocation7 + $0xf8] sm:$0xf]
        %v1422 = vld [vmem:[#allocation7 + $0xfc] sm:$0xf]
        %v1423 = vld [vmem:[#allocation7 + $0x100] sm:$0xf]
        %v1424 = vld [vmem:[#allocation7 + $0x104] sm:$0xf]
        %v1425 = vld [vmem:[#allocation7 + $0x108] sm:$0xf]
        %v1426 = vld [vmem:[#allocation7 + $0x10c] sm:$0xf]
        %v1427 = vld [vmem:[#allocation7 + $0x110] sm:$0xf]
        %v1428 = vld [vmem:[#allocation7 + $0x114] sm:$0xf]
        %v1429 = vld [vmem:[#allocation7 + $0x118] sm:$0xf]
        %v1430 = vld [vmem:[#allocation7 + $0x11c] sm:$0xf]
        %v1431 = vld [vmem:[#allocation7 + $0x120] sm:$0xf]
        %v1432 = vld [vmem:[#allocation7 + $0x124] sm:$0xf]
        %v1433 = vld [vmem:[#allocation7 + $0x128] sm:$0xf]
        %v1434 = vld [vmem:[#allocation7 + $0x12c] sm:$0xf]
        %v1435 = vld [vmem:[#allocation7 + $0x130] sm:$0xf]
        %v1436 = vld [vmem:[#allocation7 + $0x134] sm:$0xf]
        %v1437 = vld [vmem:[#allocation7 + $0x138] sm:$0xf]
        %v1438 = vld [vmem:[#allocation7 + $0x13c] sm:$0xf]
        %v1439 = vld [vmem:[#allocation7 + $0x140] sm:$0xf]
        %v1440 = vld [vmem:[#allocation7 + $0x144] sm:$0xf]
        %v1441 = vld [vmem:[#allocation7 + $0x148] sm:$0xf]
        %v1442 = vld [vmem:[#allocation7 + $0x14c] sm:$0xf]
        %v1443 = vld [vmem:[#allocation7 + $0x150] sm:$0xf]
        %v1444 = vld [vmem:[#allocation7 + $0x154] sm:$0xf]
        %v1445 = vld [vmem:[#allocation7 + $0x158] sm:$0xf]
        %v1446 = vld [vmem:[#allocation7 + $0x15c] sm:$0xf]
        %v1447 = vld [vmem:[#allocation7 + $0x160] sm:$0xf]
        %v1448 = vld [vmem:[#allocation7 + $0x164] sm:$0xf]
        %v1449 = vld [vmem:[#allocation7 + $0x168] sm:$0xf]
        %v1450 = vld [vmem:[#allocation7 + $0x16c] sm:$0xf]
        %v1451 = vld [vmem:[#allocation7 + $0x170] sm:$0xf]
        %v1452 = vld [vmem:[#allocation7 + $0x174] sm:$0xf]
        %v1453 = vld [vmem:[#allocation7 + $0x178] sm:$0xf]
        %v1454 = vld [vmem:[#allocation7 + $0x17c] sm:$0xf]
        %v1455 = vld [vmem:[#allocation7 + $0x180] sm:$0xf]
        %v1456 = vld [vmem:[#allocation7 + $0x184] sm:$0xf]
        %v1457 = vld [vmem:[#allocation7 + $0x188] sm:$0xf]
        %v1458 = vld [vmem:[#allocation7 + $0x18c] sm:$0xf]
        %v1459 = vld [vmem:[#allocation7 + $0x190] sm:$0xf]
        %v1460 = vld [vmem:[#allocation7 + $0x194] sm:$0xf]
        %v1461 = vld [vmem:[#allocation7 + $0x198] sm:$0xf]
        %v1462 = vld [vmem:[#allocation7 + $0x19c] sm:$0xf]
        %v1463 = vld [vmem:[#allocation7 + $0x1a0] sm:$0xf]
        %v1464 = vld [vmem:[#allocation7 + $0x1a4] sm:$0xf]
        %v1465 = vld [vmem:[#allocation7 + $0x1a8] sm:$0xf]
        %v1466 = vld [vmem:[#allocation7 + $0x1ac] sm:$0xf]
        %v1467 = vld [vmem:[#allocation7 + $0x1b0] sm:$0xf]
        %v1468 = vld [vmem:[#allocation7 + $0x1b4] sm:$0xf]
        %v1469 = vld [vmem:[#allocation7 + $0x1b8] sm:$0xf]
        %v1470 = vld [vmem:[#allocation7 + $0x1bc] sm:$0xf]
        %v1471 = vld [vmem:[#allocation7 + $0x1c0] sm:$0xf]
        %v1472 = vld [vmem:[#allocation7 + $0x1c4] sm:$0xf]
        %v1473 = vld [vmem:[#allocation7 + $0x1c8] sm:$0xf]
        %v1474 = vld [vmem:[#allocation7 + $0x1cc] sm:$0xf]
        %v1475 = vld [vmem:[#allocation7 + $0x1d0] sm:$0xf]
        %v1476 = vld [vmem:[#allocation7 + $0x1d4] sm:$0xf]
        %v1477 = vld [vmem:[#allocation7 + $0x1d8] sm:$0xf]
        %v1478 = vld [vmem:[#allocation7 + $0x1dc] sm:$0xf]
        %v1479 = vld [vmem:[#allocation7 + $0x1e0] sm:$0xf]
        %v1480 = vld [vmem:[#allocation7 + $0x1e4] sm:$0xf]
        %v1481 = vld [vmem:[#allocation7 + $0x1e8] sm:$0xf]
        %v1482 = vld [vmem:[#allocation7 + $0x1ec] sm:$0xf]
        %v1483 = vld [vmem:[#allocation7 + $0x1f0] sm:$0xf]
        %v1484 = vld [vmem:[#allocation7 + $0x1f4] sm:$0xf]
        %v1485 = vld [vmem:[#allocation7 + $0x1f8] sm:$0xf]
        %v1486 = vld [vmem:[#allocation7 + $0x1fc] sm:$0xf]
        %v1487 = vld [vmem:[%s4] sm:$0x1]
        %v1489 = vperm.slane %v1487, 0
        %v1619 = vunpack.c.l.b16 %v1359
        %v1620 = vunpack.c.l.b16 %v1360
        %v1621 = vunpack.c.l.b16 %v1361
        %v1622 = vunpack.c.l.b16 %v1362
        %v1623 = vunpack.c.l.b16 %v1363
        %v1624 = vunpack.c.l.b16 %v1364
        %v1625 = vunpack.c.l.b16 %v1365
        %v1626 = vunpack.c.l.b16 %v1366
        %v1627 = vunpack.c.l.b16 %v1367
        %v1628 = vunpack.c.l.b16 %v1368
        %v1629 = vunpack.c.l.b16 %v1369
        %v1630 = vunpack.c.l.b16 %v1370
        %v1631 = vunpack.c.l.b16 %v1371
        %v1632 = vunpack.c.l.b16 %v1372
        %v1633 = vunpack.c.l.b16 %v1373
        %v1634 = vunpack.c.l.b16 %v1374
        %v1635 = vunpack.c.l.b16 %v1375
        %v1636 = vunpack.c.l.b16 %v1376
        %v1637 = vunpack.c.l.b16 %v1377
        %v1638 = vunpack.c.l.b16 %v1378
        %v1639 = vunpack.c.l.b16 %v1379
        %v1640 = vunpack.c.l.b16 %v1380
        %v1641 = vunpack.c.l.b16 %v1381
        %v1642 = vunpack.c.l.b16 %v1382
        %v1643 = vunpack.c.l.b16 %v1383
        %v1644 = vunpack.c.l.b16 %v1384
        %v1645 = vunpack.c.l.b16 %v1385
        %v1646 = vunpack.c.l.b16 %v1386
        %v1647 = vunpack.c.l.b16 %v1387
        %v1648 = vunpack.c.l.b16 %v1388
        %v1649 = vunpack.c.l.b16 %v1389
        %v1650 = vunpack.c.l.b16 %v1390
        %v1651 = vunpack.c.l.b16 %v1391
        %v1652 = vunpack.c.l.b16 %v1392
        %v1653 = vunpack.c.l.b16 %v1393
        %v1654 = vunpack.c.l.b16 %v1394
        %v1655 = vunpack.c.l.b16 %v1395
        %v1656 = vunpack.c.l.b16 %v1396
        %v1657 = vunpack.c.l.b16 %v1397
        %v1658 = vunpack.c.l.b16 %v1398
        %v1659 = vunpack.c.l.b16 %v1399
        %v1660 = vunpack.c.l.b16 %v1400
        %v1661 = vunpack.c.l.b16 %v1401
        %v1662 = vunpack.c.l.b16 %v1402
        %v1663 = vunpack.c.l.b16 %v1403
        %v1664 = vunpack.c.l.b16 %v1404
        %v1665 = vunpack.c.l.b16 %v1405
        %v1666 = vunpack.c.l.b16 %v1406
        %v1667 = vunpack.c.l.b16 %v1407
        %v1668 = vunpack.c.l.b16 %v1408
        %v1669 = vunpack.c.l.b16 %v1409
        %v1670 = vunpack.c.l.b16 %v1410
        %v1671 = vunpack.c.l.b16 %v1411
        %v1672 = vunpack.c.l.b16 %v1412
        %v1673 = vunpack.c.l.b16 %v1413
        %v1674 = vunpack.c.l.b16 %v1414
        %v1675 = vunpack.c.l.b16 %v1415
        %v1676 = vunpack.c.l.b16 %v1416
        %v1677 = vunpack.c.l.b16 %v1417
        %v1678 = vunpack.c.l.b16 %v1418
        %v1679 = vunpack.c.l.b16 %v1419
        %v1680 = vunpack.c.l.b16 %v1420
        %v1681 = vunpack.c.l.b16 %v1421
        %v1682 = vunpack.c.l.b16 %v1422
        %v1683 = vunpack.c.l.b16 %v1423
        %v1684 = vunpack.c.l.b16 %v1424
        %v1685 = vunpack.c.l.b16 %v1425
        %v1686 = vunpack.c.l.b16 %v1426
        %v1687 = vunpack.c.l.b16 %v1427
        %v1688 = vunpack.c.l.b16 %v1428
        %v1689 = vunpack.c.l.b16 %v1429
        %v1690 = vunpack.c.l.b16 %v1430
        %v1691 = vunpack.c.l.b16 %v1431
        %v1692 = vunpack.c.l.b16 %v1432
        %v1693 = vunpack.c.l.b16 %v1433
        %v1694 = vunpack.c.l.b16 %v1434
        %v1695 = vunpack.c.l.b16 %v1435
        %v1696 = vunpack.c.l.b16 %v1436
        %v1697 = vunpack.c.l.b16 %v1437
        %v1698 = vunpack.c.l.b16 %v1438
        %v1699 = vunpack.c.l.b16 %v1439
        %v1700 = vunpack.c.l.b16 %v1440
        %v1701 = vunpack.c.l.b16 %v1441
        %v1702 = vunpack.c.l.b16 %v1442
        %v1703 = vunpack.c.l.b16 %v1443
        %v1704 = vunpack.c.l.b16 %v1444
        %v1705 = vunpack.c.l.b16 %v1445
        %v1706 = vunpack.c.l.b16 %v1446
        %v1707 = vunpack.c.l.b16 %v1447
        %v1708 = vunpack.c.l.b16 %v1448
        %v1709 = vunpack.c.l.b16 %v1449
        %v1710 = vunpack.c.l.b16 %v1450
        %v1711 = vunpack.c.l.b16 %v1451
        %v1712 = vunpack.c.l.b16 %v1452
        %v1713 = vunpack.c.l.b16 %v1453
        %v1714 = vunpack.c.l.b16 %v1454
        %v1715 = vunpack.c.l.b16 %v1455
        %v1716 = vunpack.c.l.b16 %v1456
        %v1717 = vunpack.c.l.b16 %v1457
        %v1718 = vunpack.c.l.b16 %v1458
        %v1719 = vunpack.c.l.b16 %v1459
        %v1720 = vunpack.c.l.b16 %v1460
        %v1721 = vunpack.c.l.b16 %v1461
        %v1722 = vunpack.c.l.b16 %v1462
        %v1723 = vunpack.c.l.b16 %v1463
        %v1724 = vunpack.c.l.b16 %v1464
        %v1725 = vunpack.c.l.b16 %v1465
        %v1726 = vunpack.c.l.b16 %v1466
        %v1727 = vunpack.c.l.b16 %v1467
        %v1728 = vunpack.c.l.b16 %v1468
        %v1729 = vunpack.c.l.b16 %v1469
        %v1730 = vunpack.c.l.b16 %v1470
        %v1731 = vunpack.c.l.b16 %v1471
        %v1732 = vunpack.c.l.b16 %v1472
        %v1733 = vunpack.c.l.b16 %v1473
        %v1734 = vunpack.c.l.b16 %v1474
        %v1735 = vunpack.c.l.b16 %v1475
        %v1736 = vunpack.c.l.b16 %v1476
        %v1737 = vunpack.c.l.b16 %v1477
        %v1738 = vunpack.c.l.b16 %v1478
        %v1739 = vunpack.c.l.b16 %v1479
        %v1740 = vunpack.c.l.b16 %v1480
        %v1741 = vunpack.c.l.b16 %v1481
        %v1742 = vunpack.c.l.b16 %v1482
        %v1743 = vunpack.c.l.b16 %v1483
        %v1744 = vunpack.c.l.b16 %v1484
        %v1745 = vunpack.c.l.b16 %v1485
        %v1746 = vunpack.c.l.b16 %v1486
        %v1747 = vpack.c.b16 %v1620, %v1619
        %v1748 = vpack.c.b16 %v1622, %v1621
        %v1749 = vpack.c.b16 %v1624, %v1623
        %v1750 = vpack.c.b16 %v1626, %v1625
        %v1751 = vpack.c.b16 %v1628, %v1627
        %v1752 = vpack.c.b16 %v1630, %v1629
        %v1753 = vpack.c.b16 %v1632, %v1631
        %v1754 = vpack.c.b16 %v1634, %v1633
        %v1755 = vpack.c.b16 %v1636, %v1635
        %v1756 = vpack.c.b16 %v1638, %v1637
        %v1757 = vpack.c.b16 %v1640, %v1639
        %v1758 = vpack.c.b16 %v1642, %v1641
        %v1759 = vpack.c.b16 %v1644, %v1643
        %v1760 = vpack.c.b16 %v1646, %v1645
        %v1761 = vpack.c.b16 %v1648, %v1647
        %v1762 = vpack.c.b16 %v1650, %v1649
        %v1763 = vpack.c.b16 %v1652, %v1651
        %v1764 = vpack.c.b16 %v1654, %v1653
        %v1765 = vpack.c.b16 %v1656, %v1655
        %v1766 = vpack.c.b16 %v1658, %v1657
        %v1767 = vpack.c.b16 %v1660, %v1659
        %v1768 = vpack.c.b16 %v1662, %v1661
        %v1769 = vpack.c.b16 %v1664, %v1663
        %v1770 = vpack.c.b16 %v1666, %v1665
        %v1771 = vpack.c.b16 %v1668, %v1667
        %v1772 = vpack.c.b16 %v1670, %v1669
        %v1773 = vpack.c.b16 %v1672, %v1671
        %v1774 = vpack.c.b16 %v1674, %v1673
        %v1775 = vpack.c.b16 %v1676, %v1675
        %v1776 = vpack.c.b16 %v1678, %v1677
        %v1777 = vpack.c.b16 %v1680, %v1679
        %v1778 = vpack.c.b16 %v1682, %v1681
        %v1779 = vpack.c.b16 %v1684, %v1683
        %v1780 = vpack.c.b16 %v1686, %v1685
        %v1781 = vpack.c.b16 %v1688, %v1687
        %v1782 = vpack.c.b16 %v1690, %v1689
        %v1783 = vpack.c.b16 %v1692, %v1691
        %v1784 = vpack.c.b16 %v1694, %v1693
        %v1785 = vpack.c.b16 %v1696, %v1695
        %v1786 = vpack.c.b16 %v1698, %v1697
        %v1787 = vpack.c.b16 %v1700, %v1699
        %v1788 = vpack.c.b16 %v1702, %v1701
        %v1789 = vpack.c.b16 %v1704, %v1703
        %v1790 = vpack.c.b16 %v1706, %v1705
        %v1791 = vpack.c.b16 %v1708, %v1707
        %v1792 = vpack.c.b16 %v1710, %v1709
        %v1793 = vpack.c.b16 %v1712, %v1711
        %v1794 = vpack.c.b16 %v1714, %v1713
        %v1795 = vpack.c.b16 %v1716, %v1715
        %v1796 = vpack.c.b16 %v1718, %v1717
        %v1797 = vpack.c.b16 %v1720, %v1719
        %v1798 = vpack.c.b16 %v1722, %v1721
        %v1799 = vpack.c.b16 %v1724, %v1723
        %v1800 = vpack.c.b16 %v1726, %v1725
        %v1801 = vpack.c.b16 %v1728, %v1727
        %v1802 = vpack.c.b16 %v1730, %v1729
        %v1803 = vpack.c.b16 %v1732, %v1731
        %v1804 = vpack.c.b16 %v1734, %v1733
        %v1805 = vpack.c.b16 %v1736, %v1735
        %v1806 = vpack.c.b16 %v1738, %v1737
        %v1807 = vpack.c.b16 %v1740, %v1739
        %v1808 = vpack.c.b16 %v1742, %v1741
        %v1809 = vpack.c.b16 %v1744, %v1743
        %v1810 = vpack.c.b16 %v1746, %v1745
        %1875 = vmatpush.bf16.msra.mxu0 %v1754
        %1876 = vmatpush.bf16.msra.mxu0 %v1753
        %1877 = vmatpush.bf16.msra.mxu0 %v1752
        %1878 = vmatpush.bf16.msra.mxu0 %v1751
        %1879 = vmatpush.bf16.msra.mxu0 %v1750
        %1880 = vmatpush.bf16.msra.mxu0 %v1749
        %1881 = vmatpush.bf16.msra.mxu0 %v1748
        %1882 = vmatpush.bf16.msra.mxu0 %v1747
        %1883 = vmatmul.bf16.gmra.mxu0 %v1351
        %v1884 = vpop.f32.mrf.mxu0
        %v1885 = vadd.f32 %v1489, %v1884
        %v1886 = vpop.f32.mrf.mxu0
        %v1887 = vadd.f32 %v1489, %v1886
        %1888 = vdwg.mxu0
        %1889 = vmatpush.bf16.msra.mxu0 %v1762
        %1890 = vmatpush.bf16.msra.mxu0 %v1761
        %1891 = vmatpush.bf16.msra.mxu0 %v1760
        %1892 = vmatpush.bf16.msra.mxu0 %v1759
        %1893 = vmatpush.bf16.msra.mxu0 %v1758
        %1894 = vmatpush.bf16.msra.mxu0 %v1757
        %1895 = vmatpush.bf16.msra.mxu0 %v1756
        %1896 = vmatpush.bf16.msra.mxu0 %v1755
        %1897 = vmatmul.bf16.gmra.mxu0 %v1352
        %v1898 = vpop.f32.mrf.mxu0
        %v1899 = vadd.f32 %v1885, %v1898
        %v1900 = vpop.f32.mrf.mxu0
        %v1901 = vadd.f32 %v1887, %v1900
        %1902 = vdwg.mxu0
        %1903 = vmatpush.bf16.msra.mxu0 %v1770
        %1904 = vmatpush.bf16.msra.mxu0 %v1769
        %1905 = vmatpush.bf16.msra.mxu0 %v1768
        %1906 = vmatpush.bf16.msra.mxu0 %v1767
        %1907 = vmatpush.bf16.msra.mxu0 %v1766
        %1908 = vmatpush.bf16.msra.mxu0 %v1765
        %1909 = vmatpush.bf16.msra.mxu0 %v1764
        %1910 = vmatpush.bf16.msra.mxu0 %v1763
        %1911 = vmatmul.bf16.gmra.mxu0 %v1353
        %v1912 = vpop.f32.mrf.mxu0
        %v1913 = vadd.f32 %v1899, %v1912
        %v1914 = vpop.f32.mrf.mxu0
        %v1915 = vadd.f32 %v1901, %v1914
        %1916 = vdwg.mxu0
        %1917 = vmatpush.bf16.msra.mxu0 %v1778
        %1918 = vmatpush.bf16.msra.mxu0 %v1777
        %1919 = vmatpush.bf16.msra.mxu0 %v1776
        %1920 = vmatpush.bf16.msra.mxu0 %v1775
        %1921 = vmatpush.bf16.msra.mxu0 %v1774
        %1922 = vmatpush.bf16.msra.mxu0 %v1773
        %1923 = vmatpush.bf16.msra.mxu0 %v1772
        %1924 = vmatpush.bf16.msra.mxu0 %v1771
        %1925 = vmatmul.bf16.gmra.mxu0 %v1354
        %v1926 = vpop.f32.mrf.mxu0
        %v1927 = vadd.f32 %v1913, %v1926
        %v1928 = vpop.f32.mrf.mxu0
        %v1929 = vadd.f32 %v1915, %v1928
        %1930 = vdwg.mxu0
        %1931 = vmatpush.bf16.msra.mxu0 %v1786
        %1932 = vmatpush.bf16.msra.mxu0 %v1785
        %1933 = vmatpush.bf16.msra.mxu0 %v1784
        %1934 = vmatpush.bf16.msra.mxu0 %v1783
        %1935 = vmatpush.bf16.msra.mxu0 %v1782
        %1936 = vmatpush.bf16.msra.mxu0 %v1781
        %1937 = vmatpush.bf16.msra.mxu0 %v1780
        %1938 = vmatpush.bf16.msra.mxu0 %v1779
        %1939 = vmatmul.bf16.gmra.mxu0 %v1355
        %v1940 = vpop.f32.mrf.mxu0
        %v1941 = vadd.f32 %v1927, %v1940
        %v1942 = vpop.f32.mrf.mxu0
        %v1943 = vadd.f32 %v1929, %v1942
        %1944 = vdwg.mxu0
        %1945 = vmatpush.bf16.msra.mxu0 %v1794
        %1946 = vmatpush.bf16.msra.mxu0 %v1793
        %1947 = vmatpush.bf16.msra.mxu0 %v1792
        %1948 = vmatpush.bf16.msra.mxu0 %v1791
        %1949 = vmatpush.bf16.msra.mxu0 %v1790
        %1950 = vmatpush.bf16.msra.mxu0 %v1789
        %1951 = vmatpush.bf16.msra.mxu0 %v1788
        %1952 = vmatpush.bf16.msra.mxu0 %v1787
        %1953 = vmatmul.bf16.gmra.mxu0 %v1356
        %v1954 = vpop.f32.mrf.mxu0
        %v1955 = vadd.f32 %v1941, %v1954
        %v1956 = vpop.f32.mrf.mxu0
        %v1957 = vadd.f32 %v1943, %v1956
        %1958 = vdwg.mxu0
        %1959 = vmatpush.bf16.msra.mxu0 %v1802
        %1960 = vmatpush.bf16.msra.mxu0 %v1801
        %1961 = vmatpush.bf16.msra.mxu0 %v1800
        %1962 = vmatpush.bf16.msra.mxu0 %v1799
        %1963 = vmatpush.bf16.msra.mxu0 %v1798
        %1964 = vmatpush.bf16.msra.mxu0 %v1797
        %1965 = vmatpush.bf16.msra.mxu0 %v1796
        %1966 = vmatpush.bf16.msra.mxu0 %v1795
        %1967 = vmatmul.bf16.gmra.mxu0 %v1357
        %v1968 = vpop.f32.mrf.mxu0
        %v1969 = vadd.f32 %v1955, %v1968
        %v1970 = vpop.f32.mrf.mxu0
        %v1971 = vadd.f32 %v1957, %v1970
        %1972 = vdwg.mxu0
        %1973 = vmatpush.bf16.msra.mxu0 %v1810
        %1974 = vmatpush.bf16.msra.mxu0 %v1809
        %1975 = vmatpush.bf16.msra.mxu0 %v1808
        %1976 = vmatpush.bf16.msra.mxu0 %v1807
        %1977 = vmatpush.bf16.msra.mxu0 %v1806
        %1978 = vmatpush.bf16.msra.mxu0 %v1805
        %1979 = vmatpush.bf16.msra.mxu0 %v1804
        %1980 = vmatpush.bf16.msra.mxu0 %v1803
        %1981 = vmatmul.bf16.gmra.mxu0 %v1358
        %v1982 = vpop.f32.mrf.mxu0
        %v1983 = vadd.f32 %v1969, %v1982
        %v1984 = vpop.f32.mrf.mxu0
        %v1985 = vadd.f32 %v1971, %v1984
        %1986 = vdwg.mxu0
        %v1987 = vpack.c.bf16 %v1985, %v1983
        %v1988 = vld [vmem:[%s5] sm:$0xf]
        %v1989 = vld [vmem:[%s5 + $0x4] sm:$0xf]
        %v1990 = vld [vmem:[%s5 + $0x8] sm:$0xf]
        %v1991 = vld [vmem:[%s5 + $0xc] sm:$0xf]
        %v1992 = vld [vmem:[%s5 + $0x10] sm:$0xf]
        %v1993 = vld [vmem:[%s5 + $0x14] sm:$0xf]
        %v1994 = vld [vmem:[%s5 + $0x18] sm:$0xf]
        %v1995 = vld [vmem:[%s5 + $0x1c] sm:$0xf]
        %v1996 = vld [vmem:[%s5 + $0x20] sm:$0xf]
        %v1997 = vld [vmem:[%s5 + $0x24] sm:$0xf]
        %v1998 = vld [vmem:[%s5 + $0x28] sm:$0xf]
        %v1999 = vld [vmem:[%s5 + $0x2c] sm:$0xf]
        %v2000 = vld [vmem:[%s5 + $0x30] sm:$0xf]
        %v2001 = vld [vmem:[%s5 + $0x34] sm:$0xf]
        %v2002 = vld [vmem:[%s5 + $0x38] sm:$0xf]
        %v2003 = vld [vmem:[%s5 + $0x3c] sm:$0xf]
        %v2004 = vld [vmem:[#allocation2] sm:$0x1]
        %v2006 = vperm.slane %v2004, 0
        %v2024 = vunpack.c.l.b16 %v1988
        %v2025 = vunpack.c.l.b16 %v1989
        %v2026 = vunpack.c.l.b16 %v1990
        %v2027 = vunpack.c.l.b16 %v1991
        %v2028 = vunpack.c.l.b16 %v1992
        %v2029 = vunpack.c.l.b16 %v1993
        %v2030 = vunpack.c.l.b16 %v1994
        %v2031 = vunpack.c.l.b16 %v1995
        %v2032 = vunpack.c.l.b16 %v1996
        %v2033 = vunpack.c.l.b16 %v1997
        %v2034 = vunpack.c.l.b16 %v1998
        %v2035 = vunpack.c.l.b16 %v1999
        %v2036 = vunpack.c.l.b16 %v2000
        %v2037 = vunpack.c.l.b16 %v2001
        %v2038 = vunpack.c.l.b16 %v2002
        %v2039 = vunpack.c.l.b16 %v2003
        %v2040 = vpack.c.b16 %v2025, %v2024
        %v2041 = vpack.c.b16 %v2027, %v2026
        %v2042 = vpack.c.b16 %v2029, %v2028
        %v2043 = vpack.c.b16 %v2031, %v2030
        %v2044 = vpack.c.b16 %v2033, %v2032
        %v2045 = vpack.c.b16 %v2035, %v2034
        %v2046 = vpack.c.b16 %v2037, %v2036
        %v2047 = vpack.c.b16 %v2039, %v2038
        %2056 = vmatpush.bf16.msra.mxu0 %v2047
        %2057 = vmatpush.bf16.msra.mxu0 %v2046
        %2058 = vmatpush.bf16.msra.mxu0 %v2045
        %2059 = vmatpush.bf16.msra.mxu0 %v2044
        %2060 = vmatpush.bf16.msra.mxu0 %v2043
        %2061 = vmatpush.bf16.msra.mxu0 %v2042
        %2062 = vmatpush.bf16.msra.mxu0 %v2041
        %2063 = vmatpush.bf16.msra.mxu0 %v2040
        %2064 = vmatmul.bf16.gmra.mxu0 %v1987
        %v2065 = vpop.f32.mrf.mxu0
        %v2066 = vadd.f32 %v2006, %v2065
        %v2067 = vpop.f32.mrf.mxu0
        %v2068 = vadd.f32 %v2006, %v2067
        %2069 = vdwg.mxu0
        %vm2070 = vcmask 7168
        %2071 = vst.msk [vmem:[%s333] sm:$0xff] %vm2070, %v2066
        %2072 = vst.msk [vmem:[%s333 + $0x8] sm:$0xff] %vm2070, %v2068
        %s2073 = smul.u32 2, %s22
        %p2074 = scmp.lt.s32.totalorder %s2073, 3
        %s2075 = scalar_select %p2074, %s2073, 3
        %s2076 = smul.addr %s2075, 8
        %s2077 = scalar_lea.vmem %s7, %s2076
        // Predicated region
        $region61: #{tpu_custom_call.1} parent=47 // pred_check
          %p2078 = pneg %p192
        $region62: #{tpu_custom_call.1} parent=47 // pred_check_branch
          %2080 = sbr.rel (%p2078) target = $region64
        $region63: #{tpu_custom_call.1} parent=47 // pred_region
          %s2081 = smul.u32 2, %s22
        $region64: #{tpu_custom_call.1} parent=47 // pred_fallthru
          _
      $region48: #{tpu_custom_call.1} parent=5 // pred_fallthru
        _
      %p2082 = scmp.le.s32.totalorder 2, %s17
      // Predicated region
      $region65: #{tpu_custom_call.1} parent=5 // pred_check
        %p2083 = pneg %p2082
      $region66: #{tpu_custom_call.1} parent=5 // pred_check_branch
        %2085 = sbr.rel (%p2083) target = $region68
      $region67: #{tpu_custom_call.1} parent=5 // pred_region
        %s2086 = ssub.s32 %s17, 2
        // Predicated region
        $region69: #{tpu_custom_call.1} parent=67 // pred_check
          %p2087 = pneg %p198
        $region70: #{tpu_custom_call.1} parent=67 // pred_check_branch
          %2089 = sbr.rel (%p2087) target = $region72
        $region71: #{tpu_custom_call.1} parent=67 // pred_region
          %s2090 = smul.u32 2, %s23
          %p2091 = scmp.lt.s32.totalorder %s2090, 3
          %s2092 = scalar_select %p2091, %s2090, 3
          %s2093 = smul.addr %s2092, 8
          %s2094 = scalar_lea.vmem %s7, %s2093
        $region72: #{tpu_custom_call.1} parent=67 // pred_fallthru
          _
      $region68: #{tpu_custom_call.1} parent=5 // pred_fallthru
        _
    $region6: #{tpu_custom_call.1} parent=1 // loop_footer
      %s21 = sadd.s32 1, %s17
    $region7: #{tpu_custom_call.1} parent=1 // loop_footer_branch
      %16 = sbr.rel target = $region3
    $region8: #{tpu_custom_call.1} parent=1 // loop_exit
      _
    %2095 = vsyncpa [#allocation4], 1
    %s2096 = scalar_lea.sflag [#allocation4], 1
    %2097 = vsyncpa %s2096, 1
    %2098 = vsyncpa [#allocation6], 1

</llo_original>
